<compile_context>
chip_gen: v7x
topology: tpu7x:2x2x1
jax: 0.10.0
libtpu: 0.0.40
codegen_flags: <defaults>
</compile_context>

<pallas_src>
import jax
import jax.numpy as jnp
from jax.experimental import pallas as pl
from jax.experimental.pallas import tpu as pltpu

EPS = 1e-5


# ---------------------------------------------------------------------------
# Fused Pallas kernel factory (closes over static shape configuration)
# ---------------------------------------------------------------------------
def _make_resblock_kernel(N, C, H, W):
    Hp, Wp = H + 2, W + 2
    L = N * Hp * Wp                      # padded-flat spatial length (lane axis)
    B = Wp + 1                           # max |tap offset| = halo slack per side
    inv_count = 1.0 / float(N * H * W)   # BN averages over valid pixels only
    # tap t = ky*3+kx reads padded-flat position p + offsets[t]
    offsets = tuple((ky - 1) * Wp + (kx - 1) for ky in range(3) for kx in range(3))

    def kernel(x_ref, mask_ref, w1_ref, g1_ref, b1_ref, w2_ref, g2_ref, b2_ref,
               o_ref, halo_ref):
        mask = mask_ref[...]             # (1, L): 1.0 at valid interior pixels

        def batchnorm(y, gamma, beta):
            # Training-mode BN over the N*H*W valid positions (biased variance).
            mean = jnp.sum(y * mask, axis=1, keepdims=True) * inv_count
            d = (y - mean) * mask
            var = jnp.sum(d * d, axis=1, keepdims=True) * inv_count
            return (y - mean) * jax.lax.rsqrt(var + EPS) * gamma + beta

        def scatter_taps(v):
            # v: (C, L) padded-flat activation.  Row block t of the halo
            # scratch holds tap t, shifted so that halo[t*C+ci, B+p] equals
            # v[ci, p + offsets[t]] (zero outside, matching zero padding).
            for t, off in enumerate(offsets):
                col = B - off
                halo_ref[t * C:(t + 1) * C, col:col + L] = v

        # Zero the halo scratch once; the border columns stay zero for BOTH
        # convolutions (interior regions are fully overwritten each time).
        halo_ref[...] = jnp.zeros(halo_ref.shape, halo_ref.dtype)

        # ---- conv1 (C -> 2C) + BN + GLU ------------------------------------
        x = x_ref[...]                                        # (C, L) f32
        scatter_taps(x)
        y1 = jnp.dot(w1_ref[...], halo_ref[:, B:B + L],       # (2C,9C)@(9C,L)
                     preferred_element_type=jnp.float32)
        y1 = batchnorm(y1, g1_ref[...], b1_ref[...])          # (2C, L)
        # GLU over channels; mask zeroes the border so y2's im2col sees the
        # correct zero padding for conv2.
        g = y1[0:C, :] * jax.nn.sigmoid(y1[C:2 * C, :]) * mask

        # ---- conv2 (C -> C) + BN + residual --------------------------------
        scatter_taps(g)
        y2 = jnp.dot(w2_ref[...], halo_ref[:, B:B + L],       # (C,9C)@(9C,L)
                     preferred_element_type=jnp.float32)
        y2 = batchnorm(y2, g2_ref[...], b2_ref[...])

        o_ref[...] = y2 + x                                   # residual (x resident)

    return kernel, L, B


# ---------------------------------------------------------------------------
# Wrapper: layout glue (NCHW <-> channel-major padded-flat) + pallas_call
# ---------------------------------------------------------------------------
def res_block_forward(x_nchw, kernel_params):
    w1, g1, b1, w2, g2, b2 = kernel_params
    N, C, H, W = x_nchw.shape
    Hp, Wp = H + 2, W + 2

    kernel, L, B = _make_resblock_kernel(N, C, H, W)

    x = x_nchw.astype(jnp.float32)
    # Padded-flat, channel-major layout: (C, N*Hp*Wp).  The one-time input pad
    # happens in XLA on a tiny HBM tensor; everything between the two convs
    # stays inside the kernel.
    x_padf = jnp.transpose(jnp.pad(x, ((0, 0), (0, 0), (1, 1), (1, 1))),
                           (1, 0, 2, 3)).reshape(C, L)
    mask = jnp.transpose(
        jnp.pad(jnp.ones((N, 1, H, W), jnp.float32),
                ((0, 0), (0, 0), (1, 1), (1, 1))),
        (1, 0, 2, 3)).reshape(1, L)

    vmem = pl.BlockSpec(memory_space=pltpu.MemorySpace.VMEM)
    out_padf = pl.pallas_call(
        kernel,
        out_shape=jax.ShapeDtypeStruct((C, L), jnp.float32),
        in_specs=[vmem] * 8,
        out_specs=vmem,
        scratch_shapes=[
            # Shared zero-bordered halo/im2col scratch for both 3x3 convs.
            pltpu.VMEM((9 * C, L + 2 * B), jnp.float32),
        ],
    )(x_padf, mask, w1, g1, b1, w2, g2, b2)

    out = out_padf.reshape(C, N, Hp, Wp)[:, :, 1:H + 1, 1:W + 1]
    return jnp.transpose(out, (1, 0, 2, 3)).astype(x_nchw.dtype)


# ---------------------------------------------------------------------------
# Deterministic parameter init (shapes per ResBlock.__init__)
# ---------------------------------------------------------------------------
def init_torch_params(key, channel_num):
    C = channel_num
    k1, k2, k3, k4, k5, k6 = jax.random.split(key, 6)
    w1 = jax.random.normal(k1, (2 * C, C, 3, 3), jnp.float32) * 0.1   # OIHW, bias=False
    w2 = jax.random.normal(k2, (C, C, 3, 3), jnp.float32) * 0.1       # OIHW, bias=False
    gamma1 = jax.random.uniform(k3, (2 * C,), jnp.float32, 0.5, 1.5)  # BN(2C) affine
    beta1 = jax.random.normal(k4, (2 * C,), jnp.float32) * 0.1
    gamma2 = jax.random.uniform(k5, (C,), jnp.float32, 0.5, 1.5)      # BN(C) affine
    beta2 = jax.random.normal(k6, (C,), jnp.float32) * 0.1
    return w1, gamma1, beta1, w2, gamma2, beta2


def to_kernel_params(torch_params):
    """OIHW conv weights -> im2col [Cout, 9*Cin] (cols ordered ky,kx,cin to
    match the halo-scratch tap layout); BN params -> column vectors [C, 1]."""
    w1, g1, b1, w2, g2, b2 = torch_params

    def pack(w_oihw):
        cout, cin = w_oihw.shape[0], w_oihw.shape[1]
        return jnp.transpose(w_oihw, (0, 2, 3, 1)).reshape(cout, 9 * cin)

    return (pack(w1), g1.reshape(-1, 1), b1.reshape(-1, 1),
            pack(w2), g2.reshape(-1, 1), b2.reshape(-1, 1))


# ---------------------------------------------------------------------------
# Pure-JAX reference (matches PyTorch forward semantics in train mode)
# ---------------------------------------------------------------------------
def ref_res_block(x, torch_params):
    w1, g1, b1, w2, g2, b2 = torch_params
    dn = ('NCHW', 'OIHW', 'NCHW')

    def conv(z, w):
        return jax.lax.conv_general_dilated(
            z, w, (1, 1), ((1, 1), (1, 1)), dimension_numbers=dn,
            precision=jax.lax.Precision.HIGHEST)

    def bn(y, gamma, beta):
        mean = jnp.mean(y, axis=(0, 2, 3), keepdims=True)
        var = jnp.mean((y - mean) ** 2, axis=(0, 2, 3), keepdims=True)
        return ((y - mean) * jax.lax.rsqrt(var + EPS)
                * gamma.reshape(1, -1, 1, 1) + beta.reshape(1, -1, 1, 1))

    y = bn(conv(x, w1), g1, b1)
    C = x.shape[1]
    g = y[:, :C] * jax.nn.sigmoid(y[:, C:])
    return bn(conv(g, w2), g2, b2) + x


if __name__ == "__main__":
    key = jax.random.PRNGKey(0)
    kx, kp = jax.random.split(key)

    channel_num = 4
    x = jax.random.normal(kx, (2, channel_num, 16, 16), jnp.float32)   # NCHW

    torch_params = init_torch_params(kp, channel_num)
    kernel_params = to_kernel_params(torch_params)

    fwd = jax.jit(res_block_forward)
    out = jax.block_until_ready(fwd(x, kernel_params))

    ref = ref_res_block(x, torch_params)
    assert out.shape == x.shape
    # Tolerance covers MXU f32 matmul pass accuracy; any structural bug
    # (wrong tap offset / BN / GLU / residual) produces O(1) errors.
    if not jnp.allclose(out, ref, atol=1e-2, rtol=1e-2):
        max_err = float(jnp.max(jnp.abs(out - ref)))
        raise AssertionError(f"Pallas ResBlock mismatch vs reference, max_err={max_err}")

    print("KERNEL_OK")
</pallas_src>

<mosaic_0001>
module attributes {stable_mosaic.version = 11 : i64} {
  func.func @kernel(%arg0: memref<4x648xf32, #tpu.memory_space<vmem>>, %arg1: memref<1x648xf32, #tpu.memory_space<vmem>>, %arg2: memref<8x36xf32, #tpu.memory_space<vmem>>, %arg3: memref<8x1xf32, #tpu.memory_space<vmem>>, %arg4: memref<8x1xf32, #tpu.memory_space<vmem>>, %arg5: memref<4x36xf32, #tpu.memory_space<vmem>>, %arg6: memref<4x1xf32, #tpu.memory_space<vmem>>, %arg7: memref<4x1xf32, #tpu.memory_space<vmem>>, %arg8: memref<4x648xf32, #tpu.memory_space<vmem>>, %arg9: memref<36x686xf32, #tpu.memory_space<vmem>>) attributes {dimension_semantics = [], scalar_prefetch = 0 : i64, scratch_operands = 1 : i64, tpu.core_type = #tpu.core_type<tc>} {
    %c0 = arith.constant 0 : index
    %c0_0 = arith.constant 0 : index
    %0 = vector.load %arg1[%c0, %c0_0] : memref<1x648xf32, #tpu.memory_space<vmem>>, vector<1x648xf32>
    %cst = arith.constant 0.000000e+00 : f32
    %1 = vector.broadcast %cst : f32 to vector<36x686xf32>
    %c0_1 = arith.constant 0 : index
    %c0_2 = arith.constant 0 : index
    %2 = vector.load %arg9[%c0_1, %c0_2] : memref<36x686xf32, #tpu.memory_space<vmem>>, vector<36x686xf32>
    tpu.vector_store %arg9[%c0_1, %c0_2], %1 {strides = array<i32>} : memref<36x686xf32, #tpu.memory_space<vmem>>, vector<36x686xf32>,
    %c0_3 = arith.constant 0 : index
    %c0_4 = arith.constant 0 : index
    %3 = vector.load %arg0[%c0_3, %c0_4] : memref<4x648xf32, #tpu.memory_space<vmem>>, vector<4x648xf32>
    %c0_5 = arith.constant 0 : index
    %c38 = arith.constant 38 : index
    %4 = vector.load %arg9[%c0_5, %c38] : memref<36x686xf32, #tpu.memory_space<vmem>>, vector<4x648xf32>
    tpu.vector_store %arg9[%c0_5, %c38], %3 {strides = array<i32>} : memref<36x686xf32, #tpu.memory_space<vmem>>, vector<4x648xf32>,
    %c4 = arith.constant 4 : index
    %c37 = arith.constant 37 : index
    %5 = vector.load %arg9[%c4, %c37] : memref<36x686xf32, #tpu.memory_space<vmem>>, vector<4x648xf32>
    tpu.vector_store %arg9[%c4, %c37], %3 {strides = array<i32>} : memref<36x686xf32, #tpu.memory_space<vmem>>, vector<4x648xf32>,
    %c8 = arith.constant 8 : index
    %c36 = arith.constant 36 : index
    %6 = vector.load %arg9[%c8, %c36] : memref<36x686xf32, #tpu.memory_space<vmem>>, vector<4x648xf32>
    tpu.vector_store %arg9[%c8, %c36], %3 {strides = array<i32>} : memref<36x686xf32, #tpu.memory_space<vmem>>, vector<4x648xf32>,
    %c12 = arith.constant 12 : index
    %c20 = arith.constant 20 : index
    %7 = vector.load %arg9[%c12, %c20] : memref<36x686xf32, #tpu.memory_space<vmem>>, vector<4x648xf32>
    tpu.vector_store %arg9[%c12, %c20], %3 {strides = array<i32>} : memref<36x686xf32, #tpu.memory_space<vmem>>, vector<4x648xf32>,
    %c16 = arith.constant 16 : index
    %c19 = arith.constant 19 : index
    %8 = vector.load %arg9[%c16, %c19] : memref<36x686xf32, #tpu.memory_space<vmem>>, vector<4x648xf32>
    tpu.vector_store %arg9[%c16, %c19], %3 {strides = array<i32>} : memref<36x686xf32, #tpu.memory_space<vmem>>, vector<4x648xf32>,
    %c20_6 = arith.constant 20 : index
    %c18 = arith.constant 18 : index
    %9 = vector.load %arg9[%c20_6, %c18] : memref<36x686xf32, #tpu.memory_space<vmem>>, vector<4x648xf32>
    tpu.vector_store %arg9[%c20_6, %c18], %3 {strides = array<i32>} : memref<36x686xf32, #tpu.memory_space<vmem>>, vector<4x648xf32>,
    %c24 = arith.constant 24 : index
    %c2 = arith.constant 2 : index
    %10 = vector.load %arg9[%c24, %c2] : memref<36x686xf32, #tpu.memory_space<vmem>>, vector<4x648xf32>
    tpu.vector_store %arg9[%c24, %c2], %3 {strides = array<i32>} : memref<36x686xf32, #tpu.memory_space<vmem>>, vector<4x648xf32>,
    %c28 = arith.constant 28 : index
    %c1 = arith.constant 1 : index
    %11 = vector.load %arg9[%c28, %c1] : memref<36x686xf32, #tpu.memory_space<vmem>>, vector<4x648xf32>
    tpu.vector_store %arg9[%c28, %c1], %3 {strides = array<i32>} : memref<36x686xf32, #tpu.memory_space<vmem>>, vector<4x648xf32>,
    %c32 = arith.constant 32 : index
    %c0_7 = arith.constant 0 : index
    %12 = vector.load %arg9[%c32, %c0_7] : memref<36x686xf32, #tpu.memory_space<vmem>>, vector<4x648xf32>
    tpu.vector_store %arg9[%c32, %c0_7], %3 {strides = array<i32>} : memref<36x686xf32, #tpu.memory_space<vmem>>, vector<4x648xf32>,
    %c0_8 = arith.constant 0 : index
    %c0_9 = arith.constant 0 : index
    %13 = vector.load %arg2[%c0_8, %c0_9] : memref<8x36xf32, #tpu.memory_space<vmem>>, vector<8x36xf32>
    %c0_10 = arith.constant 0 : index
    %c19_11 = arith.constant 19 : index
    %14 = vector.load %arg9[%c0_10, %c19_11] : memref<36x686xf32, #tpu.memory_space<vmem>>, vector<36x648xf32>
    %cst_12 = arith.constant dense<0.000000e+00> : vector<8x648xf32>
    %15 = tpu.matmul %13, %14, %cst_12 {dimension_numbers = #tpu.dot_dimension_numbers<[1], [0], [0], [1], [0, 0, 1, 1], [], []>} : vector<8x36xf32>, vector<36x648xf32>, vector<8x648xf32> -> vector<8x648xf32>
    %c0_13 = arith.constant 0 : index
    %c0_14 = arith.constant 0 : index
    %16 = vector.load %arg3[%c0_13, %c0_14] : memref<8x1xf32, #tpu.memory_space<vmem>>, vector<8x1xf32>
    %c0_15 = arith.constant 0 : index
    %c0_16 = arith.constant 0 : index
    %17 = vector.load %arg4[%c0_15, %c0_16] : memref<8x1xf32, #tpu.memory_space<vmem>>, vector<8x1xf32>
    %18 = vector.broadcast %0 : vector<1x648xf32> to vector<8x648xf32>
    %19 = arith.mulf %15, %18 : vector<8x648xf32>
    %cst_17 = arith.constant dense<0.000000e+00> : vector<8xf32>
    %20 = vector.multi_reduction <add>, %19, %cst_17 [1] : vector<8x648xf32> to vector<8xf32>
    %21 = vector.shape_cast %20 : vector<8xf32> to vector<8x1xf32>
    %cst_18 = arith.constant 0.001953125 : f32
    %22 = vector.broadcast %cst_18 : f32 to vector<8x1xf32>
    %23 = arith.mulf %21, %22 : vector<8x1xf32>
    %24 = vector.broadcast %23 : vector<8x1xf32> to vector<8x648xf32>
    %25 = arith.subf %15, %24 : vector<8x648xf32>
    %26 = vector.broadcast %0 : vector<1x648xf32> to vector<8x648xf32>
    %27 = arith.mulf %25, %26 : vector<8x648xf32>
    %28 = arith.mulf %27, %27 : vector<8x648xf32>
    %cst_19 = arith.constant dense<0.000000e+00> : vector<8xf32>
    %29 = vector.multi_reduction <add>, %28, %cst_19 [1] : vector<8x648xf32> to vector<8xf32>
    %30 = vector.shape_cast %29 : vector<8xf32> to vector<8x1xf32>
    %cst_20 = arith.constant 0.001953125 : f32
    %31 = vector.broadcast %cst_20 : f32 to vector<8x1xf32>
    %32 = arith.mulf %30, %31 : vector<8x1xf32>
    %33 = vector.broadcast %23 : vector<8x1xf32> to vector<8x648xf32>
    %34 = arith.subf %15, %33 : vector<8x648xf32>
    %cst_21 = arith.constant 9.99999974E-6 : f32
    %35 = vector.broadcast %cst_21 : f32 to vector<8x1xf32>
    %36 = arith.addf %32, %35 : vector<8x1xf32>
    %37 = math.rsqrt %36 : vector<8x1xf32>
    %38 = vector.broadcast %37 : vector<8x1xf32> to vector<8x648xf32>
    %39 = arith.mulf %34, %38 : vector<8x648xf32>
    %40 = vector.broadcast %16 : vector<8x1xf32> to vector<8x648xf32>
    %41 = arith.mulf %39, %40 : vector<8x648xf32>
    %42 = vector.broadcast %17 : vector<8x1xf32> to vector<8x648xf32>
    %43 = arith.addf %41, %42 : vector<8x648xf32>
    %44 = vector.extract_strided_slice %43 {offsets = [0, 0], sizes = [4, 648], strides = [1, 1]} : vector<8x648xf32> to vector<4x648xf32>
    %45 = vector.extract_strided_slice %43 {offsets = [4, 0], sizes = [4, 648], strides = [1, 1]} : vector<8x648xf32> to vector<4x648xf32>
    %46 = arith.negf %45 : vector<4x648xf32>
    %47 = math.exp %46 : vector<4x648xf32>
    %cst_22 = arith.constant 1.000000e+00 : f32
    %48 = vector.broadcast %cst_22 : f32 to vector<4x648xf32>
    %49 = arith.addf %48, %47 : vector<4x648xf32>
    %50 = arith.divf %48, %49 : vector<4x648xf32>
    %51 = arith.mulf %44, %50 : vector<4x648xf32>
    %52 = vector.broadcast %0 : vector<1x648xf32> to vector<4x648xf32>
    %53 = arith.mulf %51, %52 : vector<4x648xf32>
    %c0_23 = arith.constant 0 : index
    %c38_24 = arith.constant 38 : index
    %54 = vector.load %arg9[%c0_23, %c38_24] : memref<36x686xf32, #tpu.memory_space<vmem>>, vector<4x648xf32>
    tpu.vector_store %arg9[%c0_23, %c38_24], %53 {strides = array<i32>} : memref<36x686xf32, #tpu.memory_space<vmem>>, vector<4x648xf32>,
    %c4_25 = arith.constant 4 : index
    %c37_26 = arith.constant 37 : index
    %55 = vector.load %arg9[%c4_25, %c37_26] : memref<36x686xf32, #tpu.memory_space<vmem>>, vector<4x648xf32>
    tpu.vector_store %arg9[%c4_25, %c37_26], %53 {strides = array<i32>} : memref<36x686xf32, #tpu.memory_space<vmem>>, vector<4x648xf32>,
    %c8_27 = arith.constant 8 : index
    %c36_28 = arith.constant 36 : index
    %56 = vector.load %arg9[%c8_27, %c36_28] : memref<36x686xf32, #tpu.memory_space<vmem>>, vector<4x648xf32>
    tpu.vector_store %arg9[%c8_27, %c36_28], %53 {strides = array<i32>} : memref<36x686xf32, #tpu.memory_space<vmem>>, vector<4x648xf32>,
    %c12_29 = arith.constant 12 : index
    %c20_30 = arith.constant 20 : index
    %57 = vector.load %arg9[%c12_29, %c20_30] : memref<36x686xf32, #tpu.memory_space<vmem>>, vector<4x648xf32>
    tpu.vector_store %arg9[%c12_29, %c20_30], %53 {strides = array<i32>} : memref<36x686xf32, #tpu.memory_space<vmem>>, vector<4x648xf32>,
    %c16_31 = arith.constant 16 : index
    %c19_32 = arith.constant 19 : index
    %58 = vector.load %arg9[%c16_31, %c19_32] : memref<36x686xf32, #tpu.memory_space<vmem>>, vector<4x648xf32>
    tpu.vector_store %arg9[%c16_31, %c19_32], %53 {strides = array<i32>} : memref<36x686xf32, #tpu.memory_space<vmem>>, vector<4x648xf32>,
    %c20_33 = arith.constant 20 : index
    %c18_34 = arith.constant 18 : index
    %59 = vector.load %arg9[%c20_33, %c18_34] : memref<36x686xf32, #tpu.memory_space<vmem>>, vector<4x648xf32>
    tpu.vector_store %arg9[%c20_33, %c18_34], %53 {strides = array<i32>} : memref<36x686xf32, #tpu.memory_space<vmem>>, vector<4x648xf32>,
    %c24_35 = arith.constant 24 : index
    %c2_36 = arith.constant 2 : index
    %60 = vector.load %arg9[%c24_35, %c2_36] : memref<36x686xf32, #tpu.memory_space<vmem>>, vector<4x648xf32>
    tpu.vector_store %arg9[%c24_35, %c2_36], %53 {strides = array<i32>} : memref<36x686xf32, #tpu.memory_space<vmem>>, vector<4x648xf32>,
    %c28_37 = arith.constant 28 : index
    %c1_38 = arith.constant 1 : index
    %61 = vector.load %arg9[%c28_37, %c1_38] : memref<36x686xf32, #tpu.memory_space<vmem>>, vector<4x648xf32>
    tpu.vector_store %arg9[%c28_37, %c1_38], %53 {strides = array<i32>} : memref<36x686xf32, #tpu.memory_space<vmem>>, vector<4x648xf32>,
    %c32_39 = arith.constant 32 : index
    %c0_40 = arith.constant 0 : index
    %62 = vector.load %arg9[%c32_39, %c0_40] : memref<36x686xf32, #tpu.memory_space<vmem>>, vector<4x648xf32>
    tpu.vector_store %arg9[%c32_39, %c0_40], %53 {strides = array<i32>} : memref<36x686xf32, #tpu.memory_space<vmem>>, vector<4x648xf32>,
    %c0_41 = arith.constant 0 : index
    %c0_42 = arith.constant 0 : index
    %63 = vector.load %arg5[%c0_41, %c0_42] : memref<4x36xf32, #tpu.memory_space<vmem>>, vector<4x36xf32>
    %c0_43 = arith.constant 0 : index
    %c19_44 = arith.constant 19 : index
    %64 = vector.load %arg9[%c0_43, %c19_44] : memref<36x686xf32, #tpu.memory_space<vmem>>, vector<36x648xf32>
    %cst_45 = arith.constant dense<0.000000e+00> : vector<4x648xf32>
    %65 = tpu.matmul %63, %64, %cst_45 {dimension_numbers = #tpu.dot_dimension_numbers<[1], [0], [0], [1], [0, 0, 1, 1], [], []>} : vector<4x36xf32>, vector<36x648xf32>, vector<4x648xf32> -> vector<4x648xf32>
    %c0_46 = arith.constant 0 : index
    %c0_47 = arith.constant 0 : index
    %66 = vector.load %arg6[%c0_46, %c0_47] : memref<4x1xf32, #tpu.memory_space<vmem>>, vector<4x1xf32>
    %c0_48 = arith.constant 0 : index
    %c0_49 = arith.constant 0 : index
    %67 = vector.load %arg7[%c0_48, %c0_49] : memref<4x1xf32, #tpu.memory_space<vmem>>, vector<4x1xf32>
    %68 = vector.broadcast %0 : vector<1x648xf32> to vector<4x648xf32>
    %69 = arith.mulf %65, %68 : vector<4x648xf32>
    %cst_50 = arith.constant dense<0.000000e+00> : vector<4xf32>
    %70 = vector.multi_reduction <add>, %69, %cst_50 [1] : vector<4x648xf32> to vector<4xf32>
    %71 = vector.shape_cast %70 : vector<4xf32> to vector<4x1xf32>
    %cst_51 = arith.constant 0.001953125 : f32
    %72 = vector.broadcast %cst_51 : f32 to vector<4x1xf32>
    %73 = arith.mulf %71, %72 : vector<4x1xf32>
    %74 = vector.broadcast %73 : vector<4x1xf32> to vector<4x648xf32>
    %75 = arith.subf %65, %74 : vector<4x648xf32>
    %76 = vector.broadcast %0 : vector<1x648xf32> to vector<4x648xf32>
    %77 = arith.mulf %75, %76 : vector<4x648xf32>
    %78 = arith.mulf %77, %77 : vector<4x648xf32>
    %cst_52 = arith.constant dense<0.000000e+00> : vector<4xf32>
    %79 = vector.multi_reduction <add>, %78, %cst_52 [1] : vector<4x648xf32> to vector<4xf32>
    %80 = vector.shape_cast %79 : vector<4xf32> to vector<4x1xf32>
    %cst_53 = arith.constant 0.001953125 : f32
    %81 = vector.broadcast %cst_53 : f32 to vector<4x1xf32>
    %82 = arith.mulf %80, %81 : vector<4x1xf32>
    %83 = vector.broadcast %73 : vector<4x1xf32> to vector<4x648xf32>
    %84 = arith.subf %65, %83 : vector<4x648xf32>
    %cst_54 = arith.constant 9.99999974E-6 : f32
    %85 = vector.broadcast %cst_54 : f32 to vector<4x1xf32>
    %86 = arith.addf %82, %85 : vector<4x1xf32>
    %87 = math.rsqrt %86 : vector<4x1xf32>
    %88 = vector.broadcast %87 : vector<4x1xf32> to vector<4x648xf32>
    %89 = arith.mulf %84, %88 : vector<4x648xf32>
    %90 = vector.broadcast %66 : vector<4x1xf32> to vector<4x648xf32>
    %91 = arith.mulf %89, %90 : vector<4x648xf32>
    %92 = vector.broadcast %67 : vector<4x1xf32> to vector<4x648xf32>
    %93 = arith.addf %91, %92 : vector<4x648xf32>
    %94 = arith.addf %93, %3 : vector<4x648xf32>
    %c0_55 = arith.constant 0 : index
    %c0_56 = arith.constant 0 : index
    %95 = vector.load %arg8[%c0_55, %c0_56] : memref<4x648xf32, #tpu.memory_space<vmem>>, vector<4x648xf32>
    tpu.vector_store %arg8[%c0_55, %c0_56], %94 {strides = array<i32>} : memref<4x648xf32, #tpu.memory_space<vmem>>, vector<4x648xf32>,
    return
  }
}

</mosaic_0001>

<llo_original>
// kernel: res_block_forward.1
$region0: #{res_block_forward.1}
  #allocation0 [shape = 'u32[]', space=smem, size = 0x4, offset = 0x4, fixed_abs, tag = 'smem constant byte address 0x4 - core index']
  #allocation1 [shape = 'u32[144,128]{1,0:T(1,128)}', space=vmem, size = 0x12000, scoped, tag = 'internal scratch']
  #allocation2 [shape = 'f32[36,686]{1,0:T(8,128)}', space=vmem, size = 0x1e000, scoped, tag = 'scratch operand']
  %s0 = inlined_call_operand.vmem [shape: f32[4,648], index: 0, kind: input, shape index: {}]
  %s1 = inlined_call_operand.vmem [shape: f32[1,648], index: 1, kind: input, shape index: {}]
  %s2 = inlined_call_operand.vmem [shape: f32[8,36], index: 2, kind: input, shape index: {}]
  %s3 = inlined_call_operand.vmem [shape: f32[8,1], index: 3, kind: input, shape index: {}]
  %s4 = inlined_call_operand.vmem [shape: f32[8,1], index: 4, kind: input, shape index: {}]
  %s5 = inlined_call_operand.vmem [shape: f32[4,36], index: 5, kind: input, shape index: {}]
  %s6 = inlined_call_operand.vmem [shape: f32[4,1], index: 6, kind: input, shape index: {}]
  %s7 = inlined_call_operand.vmem [shape: f32[4,1], index: 7, kind: input, shape index: {}]
  %s8 = inlined_call_operand.vmem [shape: f32[4,648], index: 8, kind: output, shape index: {}]
  %s9 = sld [smem:[#allocation0]]
  $region42: #{res_block_forward.1} parent=0
    _
  %s11 = ssub.s32 1, %s9
  %s12 = scalar_select 0, %s11, %s9
  // Predicated region
  $region2: #{res_block_forward.1} parent=0 // pred_check
    _
  $region3: #{res_block_forward.1} parent=0 // pred_check_branch
    %14 = sbr.rel (0) target = $region5
  $region4: #{res_block_forward.1} parent=0 // pred_region
    _
  $region5: #{res_block_forward.1} parent=0 // pred_fallthru
    _
  // Predicated region
  $region6: #{res_block_forward.1} parent=0 // pred_check
    _
  $region7: #{res_block_forward.1} parent=0 // pred_check_branch
    %16 = sbr.rel (0) target = $region9
  $region8: #{res_block_forward.1} parent=0 // pred_region
    _
  $region9: #{res_block_forward.1} parent=0 // pred_fallthru
    _
  // Predicated region
  $region10: #{res_block_forward.1} parent=0 // pred_check
    _
  $region11: #{res_block_forward.1} parent=0 // pred_check_branch
    %18 = sbr.rel (0) target = $region13
  $region12: #{res_block_forward.1} parent=0 // pred_region
    _
  $region13: #{res_block_forward.1} parent=0 // pred_fallthru
    _
  // Predicated region
  $region14: #{res_block_forward.1} parent=0 // pred_check
    _
  $region15: #{res_block_forward.1} parent=0 // pred_check_branch
    %20 = sbr.rel (0) target = $region17
  $region16: #{res_block_forward.1} parent=0 // pred_region
    _
  $region17: #{res_block_forward.1} parent=0 // pred_fallthru
    _
  // Predicated region
  $region18: #{res_block_forward.1} parent=0 // pred_check
    _
  $region19: #{res_block_forward.1} parent=0 // pred_check_branch
    %22 = sbr.rel (0) target = $region21
  $region20: #{res_block_forward.1} parent=0 // pred_region
    _
  $region21: #{res_block_forward.1} parent=0 // pred_fallthru
    _
  // Predicated region
  $region22: #{res_block_forward.1} parent=0 // pred_check
    _
  $region23: #{res_block_forward.1} parent=0 // pred_check_branch
    %24 = sbr.rel (0) target = $region25
  $region24: #{res_block_forward.1} parent=0 // pred_region
    _
  $region25: #{res_block_forward.1} parent=0 // pred_fallthru
    _
  // Predicated region
  $region26: #{res_block_forward.1} parent=0 // pred_check
    _
  $region27: #{res_block_forward.1} parent=0 // pred_check_branch
    %26 = sbr.rel (0) target = $region29
  $region28: #{res_block_forward.1} parent=0 // pred_region
    _
  $region29: #{res_block_forward.1} parent=0 // pred_fallthru
    _
  // Predicated region
  $region30: #{res_block_forward.1} parent=0 // pred_check
    _
  $region31: #{res_block_forward.1} parent=0 // pred_check_branch
    %28 = sbr.rel (0) target = $region33
  $region32: #{res_block_forward.1} parent=0 // pred_region
    _
  $region33: #{res_block_forward.1} parent=0 // pred_fallthru
    _
  %v29 = vld [vmem:[%s1] sm:$0x3f]
  %30 = vst [vmem:[#allocation2] sm:$0xff] 0.0
  %31 = vst [vmem:[#allocation2 + $0x8] sm:$0xff] 0.0
  %32 = vst [vmem:[#allocation2 + $0x10] sm:$0xff] 0.0
  %33 = vst [vmem:[#allocation2 + $0x18] sm:$0xff] 0.0
  %34 = vst [vmem:[#allocation2 + $0x20] sm:$0xff] 0.0
  %vm35 = vcmask 375808
  %36 = vst.msk [vmem:[#allocation2 + $0x28] sm:$0xff] %vm35, 0.0
  %37 = vst [vmem:[#allocation2 + $0x30] sm:$0xff] 0.0
  %38 = vst [vmem:[#allocation2 + $0x38] sm:$0xff] 0.0
  %39 = vst [vmem:[#allocation2 + $0x40] sm:$0xff] 0.0
  %40 = vst [vmem:[#allocation2 + $0x48] sm:$0xff] 0.0
  %41 = vst [vmem:[#allocation2 + $0x50] sm:$0xff] 0.0
  %42 = vst.msk [vmem:[#allocation2 + $0x58] sm:$0xff] %vm35, 0.0
  %43 = vst [vmem:[#allocation2 + $0x60] sm:$0xff] 0.0
  %44 = vst [vmem:[#allocation2 + $0x68] sm:$0xff] 0.0
  %45 = vst [vmem:[#allocation2 + $0x70] sm:$0xff] 0.0
  %46 = vst [vmem:[#allocation2 + $0x78] sm:$0xff] 0.0
  %47 = vst [vmem:[#allocation2 + $0x80] sm:$0xff] 0.0
  %48 = vst.msk [vmem:[#allocation2 + $0x88] sm:$0xff] %vm35, 0.0
  %49 = vst [vmem:[#allocation2 + $0x90] sm:$0xff] 0.0
  %50 = vst [vmem:[#allocation2 + $0x98] sm:$0xff] 0.0
  %51 = vst [vmem:[#allocation2 + $0xa0] sm:$0xff] 0.0
  %52 = vst [vmem:[#allocation2 + $0xa8] sm:$0xff] 0.0
  %53 = vst [vmem:[#allocation2 + $0xb0] sm:$0xff] 0.0
  %54 = vst.msk [vmem:[#allocation2 + $0xb8] sm:$0xff] %vm35, 0.0
  %55 = vst [vmem:[#allocation2 + $0xc0] sm:$0xf] 0.0
  %56 = vst [vmem:[#allocation2 + $0xc8] sm:$0xf] 0.0
  %57 = vst [vmem:[#allocation2 + $0xd0] sm:$0xf] 0.0
  %58 = vst [vmem:[#allocation2 + $0xd8] sm:$0xf] 0.0
  %59 = vst [vmem:[#allocation2 + $0xe0] sm:$0xf] 0.0
  %vm60 = vcmask 371712
  %61 = vst.msk [vmem:[#allocation2 + $0xe8] sm:$0xf] %vm60, 0.0
  %v62 = vld [vmem:[%s0] sm:$0xff]
  %v63 = vld [vmem:[%s0 + $0x8] sm:$0xff]
  %v64 = vld [vmem:[%s0 + $0x10] sm:$0xff]
  %v68 = vcombine.high %v62, %v62
  %v69 = vcombine.high %v63, %v63
  %v70 = vcombine.high %v64, %v64
  %71 = vrot.lane.b32.xlu0 %v62, 38
  %v72 = vpop.permute.xlu0 %71
  %73 = vrot.lane.b32.xlu0 %v68, 38
  %v74 = vpop.permute.xlu0 %73
  %75 = vrot.lane.b32.xlu0 %v63, 38
  %v76 = vpop.permute.xlu0 %75
  %77 = vrot.lane.b32.xlu0 %v69, 38
  %v78 = vpop.permute.xlu0 %77
  %79 = vrot.lane.b32.xlu0 %v64, 38
  %v80 = vpop.permute.xlu0 %79
  %81 = vrot.lane.b32.xlu0 %v70, 38
  %v82 = vpop.permute.xlu0 %81
  %vm83 = vcmask 310272
  %v84 = vsel %vm83, %v72, %v74
  %v85 = vsel %vm83, %v74, %v76
  %v86 = vsel %vm83, %v76, %v78
  %v87 = vsel %vm83, %v78, %v80
  %v88 = vsel %vm83, %v80, %v82
  %vm95 = vcmask 1043760
  %96 = vst.msk [vmem:[#allocation2] sm:$0xf] %vm95, %v72
  %97 = vst [vmem:[#allocation2 + $0x8] sm:$0xf] %v84
  %98 = vst [vmem:[#allocation2 + $0x10] sm:$0xf] %v85
  %99 = vst [vmem:[#allocation2 + $0x18] sm:$0xf] %v86
  %100 = vst [vmem:[#allocation2 + $0x20] sm:$0xf] %v87
  %101 = vst.msk [vmem:[#allocation2 + $0x28] sm:$0xf] %vm60, %v88
  %v102 = vcombine.low %v62, %v62
  %v103 = vcombine.low %v63, %v63
  %v104 = vcombine.low %v64, %v64
  %105 = vrot.lane.b32.xlu0 %v102, 37
  %v106 = vpop.permute.xlu0 %105
  %107 = vrot.lane.b32.xlu0 %v62, 37
  %v108 = vpop.permute.xlu0 %107
  %109 = vrot.lane.b32.xlu0 %v103, 37
  %v110 = vpop.permute.xlu0 %109
  %111 = vrot.lane.b32.xlu0 %v63, 37
  %v112 = vpop.permute.xlu0 %111
  %113 = vrot.lane.b32.xlu0 %v104, 37
  %v114 = vpop.permute.xlu0 %113
  %115 = vrot.lane.b32.xlu0 %v64, 37
  %v116 = vpop.permute.xlu0 %115
  %vm117 = vcmask 302080
  %v118 = vsel %vm117, %v106, %v108
  %v119 = vsel %vm117, %v108, %v110
  %v120 = vsel %vm117, %v110, %v112
  %v121 = vsel %vm117, %v112, %v114
  %v122 = vsel %vm117, %v114, %v116
  %vm129 = vcmask 1047852
  %130 = vst.msk [vmem:[#allocation2] sm:$0xf0] %vm129, %v106
  %131 = vst [vmem:[#allocation2 + $0x8] sm:$0xf0] %v118
  %132 = vst [vmem:[#allocation2 + $0x10] sm:$0xf0] %v119
  %133 = vst [vmem:[#allocation2 + $0x18] sm:$0xf0] %v120
  %134 = vst [vmem:[#allocation2 + $0x20] sm:$0xf0] %v121
  %vm135 = vcmask 367620
  %136 = vst.msk [vmem:[#allocation2 + $0x28] sm:$0xf0] %vm135, %v122
  %137 = vrot.lane.b32.xlu0 %v62, 36
  %v138 = vpop.permute.xlu0 %137
  %139 = vrot.lane.b32.xlu0 %v68, 36
  %v140 = vpop.permute.xlu0 %139
  %141 = vrot.lane.b32.xlu0 %v63, 36
  %v142 = vpop.permute.xlu0 %141
  %143 = vrot.lane.b32.xlu0 %v69, 36
  %v144 = vpop.permute.xlu0 %143
  %145 = vrot.lane.b32.xlu0 %v64, 36
  %v146 = vpop.permute.xlu0 %145
  %147 = vrot.lane.b32.xlu0 %v70, 36
  %v148 = vpop.permute.xlu0 %147
  %vm149 = vcmask 293888
  %v150 = vsel %vm149, %v138, %v140
  %v151 = vsel %vm149, %v140, %v142
  %v152 = vsel %vm149, %v142, %v144
  %v153 = vsel %vm149, %v144, %v146
  %v154 = vsel %vm149, %v146, %v148
  %vm161 = vcmask 1043744
  %162 = vst.msk [vmem:[#allocation2 + $0x30] sm:$0xf] %vm161, %v138
  %163 = vst [vmem:[#allocation2 + $0x38] sm:$0xf] %v150
  %164 = vst [vmem:[#allocation2 + $0x40] sm:$0xf] %v151
  %165 = vst [vmem:[#allocation2 + $0x48] sm:$0xf] %v152
  %166 = vst [vmem:[#allocation2 + $0x50] sm:$0xf] %v153
  %vm167 = vcmask 355328
  %168 = vst.msk [vmem:[#allocation2 + $0x58] sm:$0xf] %vm167, %v154
  %169 = vrot.lane.b32.xlu0 %v102, 20
  %v170 = vpop.permute.xlu0 %169
  %171 = vrot.lane.b32.xlu0 %v62, 20
  %v172 = vpop.permute.xlu0 %171
  %173 = vrot.lane.b32.xlu0 %v103, 20
  %v174 = vpop.permute.xlu0 %173
  %175 = vrot.lane.b32.xlu0 %v63, 20
  %v176 = vpop.permute.xlu0 %175
  %177 = vrot.lane.b32.xlu0 %v104, 20
  %v178 = vpop.permute.xlu0 %177
  %179 = vrot.lane.b32.xlu0 %v64, 20
  %v180 = vpop.permute.xlu0 %179
  %vm181 = vcmask 162816
  %v182 = vsel %vm181, %v170, %v172
  %v183 = vsel %vm181, %v172, %v174
  %v184 = vsel %vm181, %v174, %v176
  %v185 = vsel %vm181, %v176, %v178
  %v186 = vsel %vm181, %v178, %v180
  %vm193 = vcmask 1047716
  %194 = vst.msk [vmem:[#allocation2 + $0x30] sm:$0xf0] %vm193, %v170
  %195 = vst [vmem:[#allocation2 + $0x38] sm:$0xf0] %v182
  %196 = vst [vmem:[#allocation2 + $0x40] sm:$0xf0] %v183
  %197 = vst [vmem:[#allocation2 + $0x48] sm:$0xf0] %v184
  %198 = vst [vmem:[#allocation2 + $0x50] sm:$0xf0] %v185
  %vm199 = vcmask 228356
  %200 = vst.msk [vmem:[#allocation2 + $0x58] sm:$0xf0] %vm199, %v186
  %201 = vrot.lane.b32.xlu0 %v62, 19
  %v202 = vpop.permute.xlu0 %201
  %203 = vrot.lane.b32.xlu0 %v68, 19
  %v204 = vpop.permute.xlu0 %203
  %205 = vrot.lane.b32.xlu0 %v63, 19
  %v206 = vpop.permute.xlu0 %205
  %207 = vrot.lane.b32.xlu0 %v69, 19
  %v208 = vpop.permute.xlu0 %207
  %209 = vrot.lane.b32.xlu0 %v64, 19
  %v210 = vpop.permute.xlu0 %209
  %211 = vrot.lane.b32.xlu0 %v70, 19
  %v212 = vpop.permute.xlu0 %211
  %vm213 = vcmask 154624
  %v214 = vsel %vm213, %v202, %v204
  %v215 = vsel %vm213, %v204, %v206
  %v216 = vsel %vm213, %v206, %v208
  %v217 = vsel %vm213, %v208, %v210
  %v218 = vsel %vm213, %v210, %v212
  %vm225 = vcmask 1043608
  %226 = vst.msk [vmem:[#allocation2 + $0x60] sm:$0xf] %vm225, %v202
  %227 = vst [vmem:[#allocation2 + $0x68] sm:$0xf] %v214
  %228 = vst [vmem:[#allocation2 + $0x70] sm:$0xf] %v215
  %229 = vst [vmem:[#allocation2 + $0x78] sm:$0xf] %v216
  %230 = vst [vmem:[#allocation2 + $0x80] sm:$0xf] %v217
  %vm231 = vcmask 216064
  %232 = vst.msk [vmem:[#allocation2 + $0x88] sm:$0xf] %vm231, %v218
  %233 = vrot.lane.b32.xlu0 %v102, 18
  %v234 = vpop.permute.xlu0 %233
  %235 = vrot.lane.b32.xlu0 %v62, 18
  %v236 = vpop.permute.xlu0 %235
  %237 = vrot.lane.b32.xlu0 %v103, 18
  %v238 = vpop.permute.xlu0 %237
  %239 = vrot.lane.b32.xlu0 %v63, 18
  %v240 = vpop.permute.xlu0 %239
  %241 = vrot.lane.b32.xlu0 %v104, 18
  %v242 = vpop.permute.xlu0 %241
  %243 = vrot.lane.b32.xlu0 %v64, 18
  %v244 = vpop.permute.xlu0 %243
  %vm245 = vcmask 146432
  %v246 = vsel %vm245, %v234, %v236
  %v247 = vsel %vm245, %v236, %v238
  %v248 = vsel %vm245, %v238, %v240
  %v249 = vsel %vm245, %v240, %v242
  %v250 = vsel %vm245, %v242, %v244
  %vm257 = vcmask 1047700
  %258 = vst.msk [vmem:[#allocation2 + $0x60] sm:$0xf0] %vm257, %v234
  %259 = vst [vmem:[#allocation2 + $0x68] sm:$0xf0] %v246
  %260 = vst [vmem:[#allocation2 + $0x70] sm:$0xf0] %v247
  %261 = vst [vmem:[#allocation2 + $0x78] sm:$0xf0] %v248
  %262 = vst [vmem:[#allocation2 + $0x80] sm:$0xf0] %v249
  %vm263 = vcmask 211972
  %264 = vst.msk [vmem:[#allocation2 + $0x88] sm:$0xf0] %vm263, %v250
  %265 = vrot.lane.b32.xlu0 %v62, 2
  %v266 = vpop.permute.xlu0 %265
  %267 = vrot.lane.b32.xlu0 %v68, 2
  %v268 = vpop.permute.xlu0 %267
  %269 = vrot.lane.b32.xlu0 %v63, 2
  %v270 = vpop.permute.xlu0 %269
  %271 = vrot.lane.b32.xlu0 %v69, 2
  %v272 = vpop.permute.xlu0 %271
  %273 = vrot.lane.b32.xlu0 %v64, 2
  %v274 = vpop.permute.xlu0 %273
  %275 = vrot.lane.b32.xlu0 %v70, 2
  %v276 = vpop.permute.xlu0 %275
  %vm277 = vcmask 15360
  %v278 = vsel %vm277, %v266, %v268
  %v279 = vsel %vm277, %v268, %v270
  %v280 = vsel %vm277, %v270, %v272
  %v281 = vsel %vm277, %v272, %v274
  %v282 = vsel %vm277, %v274, %v276
  %vm289 = vcmask 1043472
  %290 = vst.msk [vmem:[#allocation2 + $0x90] sm:$0xf] %vm289, %v266
  %291 = vst [vmem:[#allocation2 + $0x98] sm:$0xf] %v278
  %292 = vst [vmem:[#allocation2 + $0xa0] sm:$0xf] %v279
  %293 = vst [vmem:[#allocation2 + $0xa8] sm:$0xf] %v280
  %294 = vst [vmem:[#allocation2 + $0xb0] sm:$0xf] %v281
  %vm295 = vcmask 76800
  %296 = vst.msk [vmem:[#allocation2 + $0xb8] sm:$0xf] %vm295, %v282
  %297 = vrot.lane.b32.xlu0 %v102, 1
  %v298 = vpop.permute.xlu0 %297
  %299 = vrot.lane.b32.xlu0 %v62, 1
  %v300 = vpop.permute.xlu0 %299
  %301 = vrot.lane.b32.xlu0 %v103, 1
  %v302 = vpop.permute.xlu0 %301
  %303 = vrot.lane.b32.xlu0 %v63, 1
  %v304 = vpop.permute.xlu0 %303
  %305 = vrot.lane.b32.xlu0 %v104, 1
  %v306 = vpop.permute.xlu0 %305
  %307 = vrot.lane.b32.xlu0 %v64, 1
  %v308 = vpop.permute.xlu0 %307
  %vm309 = vcmask 7168
  %v310 = vsel %vm309, %v298, %v300
  %v311 = vsel %vm309, %v300, %v302
  %v312 = vsel %vm309, %v302, %v304
  %v313 = vsel %vm309, %v304, %v306
  %v314 = vsel %vm309, %v306, %v308
  %vm321 = vcmask 1047564
  %322 = vst.msk [vmem:[#allocation2 + $0x90] sm:$0xf0] %vm321, %v298
  %323 = vst [vmem:[#allocation2 + $0x98] sm:$0xf0] %v310
  %324 = vst [vmem:[#allocation2 + $0xa0] sm:$0xf0] %v311
  %325 = vst [vmem:[#allocation2 + $0xa8] sm:$0xf0] %v312
  %326 = vst [vmem:[#allocation2 + $0xb0] sm:$0xf0] %v313
  %vm327 = vcmask 72708
  %328 = vst.msk [vmem:[#allocation2 + $0xb8] sm:$0xf0] %vm327, %v314
  %332 = vst [vmem:[#allocation2 + $0xc0] sm:$0xf] %v62
  %333 = vst [vmem:[#allocation2 + $0xc8] sm:$0xf] %v68
  %334 = vst [vmem:[#allocation2 + $0xd0] sm:$0xf] %v63
  %335 = vst [vmem:[#allocation2 + $0xd8] sm:$0xf] %v69
  %336 = vst [vmem:[#allocation2 + $0xe0] sm:$0xf] %v64
  %vm337 = vcmask 60416
  %338 = vst.msk [vmem:[#allocation2 + $0xe8] sm:$0xf] %vm337, %v70
  %v339 = vld [vmem:[%s2] sm:$0xff]
  %v340 = vld [vmem:[#allocation2] sm:$0xff]
  %v341 = vld [vmem:[#allocation2 + $0x8] sm:$0xff]
  %v342 = vld [vmem:[#allocation2 + $0x10] sm:$0xff]
  %v343 = vld [vmem:[#allocation2 + $0x18] sm:$0xff]
  %v344 = vld [vmem:[#allocation2 + $0x20] sm:$0xff]
  %v345 = vld [vmem:[#allocation2 + $0x28] sm:$0xff]
  %v346 = vld [vmem:[#allocation2 + $0x30] sm:$0xff]
  %v347 = vld [vmem:[#allocation2 + $0x38] sm:$0xff]
  %v348 = vld [vmem:[#allocation2 + $0x40] sm:$0xff]
  %v349 = vld [vmem:[#allocation2 + $0x48] sm:$0xff]
  %v350 = vld [vmem:[#allocation2 + $0x50] sm:$0xff]
  %v351 = vld [vmem:[#allocation2 + $0x58] sm:$0xff]
  %v352 = vld [vmem:[#allocation2 + $0x60] sm:$0xff]
  %v353 = vld [vmem:[#allocation2 + $0x68] sm:$0xff]
  %v354 = vld [vmem:[#allocation2 + $0x70] sm:$0xff]
  %v355 = vld [vmem:[#allocation2 + $0x78] sm:$0xff]
  %v356 = vld [vmem:[#allocation2 + $0x80] sm:$0xff]
  %v357 = vld [vmem:[#allocation2 + $0x88] sm:$0xff]
  %v358 = vld [vmem:[#allocation2 + $0x90] sm:$0xff]
  %v359 = vld [vmem:[#allocation2 + $0x98] sm:$0xff]
  %v360 = vld [vmem:[#allocation2 + $0xa0] sm:$0xff]
  %v361 = vld [vmem:[#allocation2 + $0xa8] sm:$0xff]
  %v362 = vld [vmem:[#allocation2 + $0xb0] sm:$0xff]
  %v363 = vld [vmem:[#allocation2 + $0xb8] sm:$0xff]
  %v364 = vld [vmem:[#allocation2 + $0xc0] sm:$0xf]
  %v365 = vld [vmem:[#allocation2 + $0xc8] sm:$0xf]
  %v366 = vld [vmem:[#allocation2 + $0xd0] sm:$0xf]
  %v367 = vld [vmem:[#allocation2 + $0xd8] sm:$0xf]
  %v368 = vld [vmem:[#allocation2 + $0xe0] sm:$0xf]
  %v369 = vld [vmem:[#allocation2 + $0xe8] sm:$0xf]
  %400 = vrot.lane.b32.xlu0 %v340, 109
  %v401 = vpop.permute.xlu0 %400
  %402 = vrot.lane.b32.xlu0 %v341, 109
  %v403 = vpop.permute.xlu0 %402
  %404 = vrot.lane.b32.xlu0 %v342, 109
  %v405 = vpop.permute.xlu0 %404
  %406 = vrot.lane.b32.xlu0 %v343, 109
  %v407 = vpop.permute.xlu0 %406
  %408 = vrot.lane.b32.xlu0 %v344, 109
  %v409 = vpop.permute.xlu0 %408
  %410 = vrot.lane.b32.xlu0 %v345, 109
  %v411 = vpop.permute.xlu0 %410
  %412 = vrot.lane.b32.xlu0 %v346, 109
  %v413 = vpop.permute.xlu0 %412
  %414 = vrot.lane.b32.xlu0 %v347, 109
  %v415 = vpop.permute.xlu0 %414
  %416 = vrot.lane.b32.xlu0 %v348, 109
  %v417 = vpop.permute.xlu0 %416
  %418 = vrot.lane.b32.xlu0 %v349, 109
  %v419 = vpop.permute.xlu0 %418
  %420 = vrot.lane.b32.xlu0 %v350, 109
  %v421 = vpop.permute.xlu0 %420
  %422 = vrot.lane.b32.xlu0 %v351, 109
  %v423 = vpop.permute.xlu0 %422
  %424 = vrot.lane.b32.xlu0 %v352, 109
  %v425 = vpop.permute.xlu0 %424
  %426 = vrot.lane.b32.xlu0 %v353, 109
  %v427 = vpop.permute.xlu0 %426
  %428 = vrot.lane.b32.xlu0 %v354, 109
  %v429 = vpop.permute.xlu0 %428
  %430 = vrot.lane.b32.xlu0 %v355, 109
  %v431 = vpop.permute.xlu0 %430
  %432 = vrot.lane.b32.xlu0 %v356, 109
  %v433 = vpop.permute.xlu0 %432
  %434 = vrot.lane.b32.xlu0 %v357, 109
  %v435 = vpop.permute.xlu0 %434
  %436 = vrot.lane.b32.xlu0 %v358, 109
  %v437 = vpop.permute.xlu0 %436
  %438 = vrot.lane.b32.xlu0 %v359, 109
  %v439 = vpop.permute.xlu0 %438
  %440 = vrot.lane.b32.xlu0 %v360, 109
  %v441 = vpop.permute.xlu0 %440
  %442 = vrot.lane.b32.xlu0 %v361, 109
  %v443 = vpop.permute.xlu0 %442
  %444 = vrot.lane.b32.xlu0 %v362, 109
  %v445 = vpop.permute.xlu0 %444
  %446 = vrot.lane.b32.xlu0 %v363, 109
  %v447 = vpop.permute.xlu0 %446
  %448 = vrot.lane.b32.xlu0 %v364, 109
  %v449 = vpop.permute.xlu0 %448
  %450 = vrot.lane.b32.xlu0 %v365, 109
  %v451 = vpop.permute.xlu0 %450
  %452 = vrot.lane.b32.xlu0 %v366, 109
  %v453 = vpop.permute.xlu0 %452
  %454 = vrot.lane.b32.xlu0 %v367, 109
  %v455 = vpop.permute.xlu0 %454
  %456 = vrot.lane.b32.xlu0 %v368, 109
  %v457 = vpop.permute.xlu0 %456
  %458 = vrot.lane.b32.xlu0 %v369, 109
  %v459 = vpop.permute.xlu0 %458
  %vm460 = vcmask 891904
  %v461 = vsel %vm460, %v401, %v403
  %v462 = vsel %vm460, %v403, %v405
  %v463 = vsel %vm460, %v405, %v407
  %v464 = vsel %vm460, %v407, %v409
  %v465 = vsel %vm460, %v409, %v411
  %v466 = vsel %vm460, %v413, %v415
  %v467 = vsel %vm460, %v415, %v417
  %v468 = vsel %vm460, %v417, %v419
  %v469 = vsel %vm460, %v419, %v421
  %v470 = vsel %vm460, %v421, %v423
  %v471 = vsel %vm460, %v425, %v427
  %v472 = vsel %vm460, %v427, %v429
  %v473 = vsel %vm460, %v429, %v431
  %v474 = vsel %vm460, %v431, %v433
  %v475 = vsel %vm460, %v433, %v435
  %v476 = vsel %vm460, %v437, %v439
  %v477 = vsel %vm460, %v439, %v441
  %v478 = vsel %vm460, %v441, %v443
  %v479 = vsel %vm460, %v443, %v445
  %v480 = vsel %vm460, %v445, %v447
  %v481 = vsel %vm460, %v449, %v451
  %v482 = vsel %vm460, %v451, %v453
  %v483 = vsel %vm460, %v453, %v455
  %v484 = vsel %vm460, %v455, %v457
  %v485 = vsel %vm460, %v457, %v459
  %v511 = vsel %vm149, %v339, 0
  %vm513 = vcmask 1043456
  %v514 = vsel %vm513, %v481, 0
  %v516 = vsel %vm513, %v482, 0
  %v518 = vsel %vm513, %v483, 0
  %v520 = vsel %vm513, %v484, 0
  %v522 = vsel %vm513, %v485, 0
  %v524 = vsel %vm513, %v459, 0
  %526 = vmatprep.subr.mxu0 %v462
  %527 = vmatpush1.msra.mxu0 %v461
  %528 = vmatprep.subr.mxu0 %v467
  %529 = vmatpush1.msra.mxu0 %v466
  %530 = vmatprep.subr.mxu0 %v472
  %531 = vmatpush1.msra.mxu0 %v471
  %532 = vmatprep.subr.mxu0 %v477
  %533 = vmatpush1.msra.mxu0 %v476
  %534 = vmatprep.subr.mxu0 %v516
  %535 = vmatpush1.msra.mxu0 %v514
  %536 = vmatprep.subr.mxu0 0.0
  %537 = vmatpush1.msra.mxu0 0.0
  %538 = vmatprep.subr.mxu0 0.0
  %539 = vmatpush1.msra.mxu0 0.0
  %540 = vmatprep.subr.mxu0 0.0
  %541 = vmatpush1.msra.mxu0 0.0
  %542 = vmatprep.subr.mxu0 0.0
  %543 = vmatpush1.msra.mxu0 0.0
  %544 = vmatprep.subr.mxu0 0.0
  %545 = vmatpush1.msra.mxu0 0.0
  %546 = vmatprep.subr.mxu0 0.0
  %547 = vmatpush1.msra.mxu0 0.0
  %548 = vmatprep.subr.mxu0 0.0
  %549 = vmatpush1.msra.mxu0 0.0
  %550 = vmatprep.subr.mxu0 0.0
  %551 = vmatpush1.msra.mxu0 0.0
  %552 = vmatprep.subr.mxu0 0.0
  %553 = vmatpush1.msra.mxu0 0.0
  %554 = vmatprep.subr.mxu0 0.0
  %555 = vmatpush1.msra.mxu0 0.0
  %556 = vmatprep.subr.mxu0 0.0
  %557 = vmatpush1.msra.mxu0 0.0
  %558 = vmatprep.subr.mxu0 0.0
  %559 = vmatpush1.msra.mxu0 0.0
  %560 = vmatprep.subr.mxu0 0.0
  %561 = vmatpush1.msra.mxu0 0.0
  %562 = vmatprep.subr.mxu0 0.0
  %563 = vmatpush1.msra.mxu0 0.0
  %564 = vmatprep.subr.mxu0 0.0
  %565 = vmatpush1.msra.mxu0 0.0
  %566 = vmatprep.subr.mxu0 0.0
  %567 = vmatpush1.msra.mxu0 0.0
  %568 = vmatprep.subr.mxu0 0.0
  %569 = vmatpush1.msra.mxu0 0.0
  %570 = vmatprep.subr.mxu0 0.0
  %571 = vmatpush1.msra.mxu0 0.0
  %572 = vmatprep.subr.mxu0 0.0
  %573 = vmatpush1.msra.mxu0 0.0
  %574 = vmatprep.subr.mxu0 0.0
  %575 = vmatpush1.msra.mxu0 0.0
  %576 = vmatprep.subr.mxu0 0.0
  %577 = vmatpush1.msra.mxu0 0.0
  %578 = vmatprep.subr.mxu0 0.0
  %579 = vmatpush1.msra.mxu0 0.0
  %580 = vmatprep.subr.mxu0 0.0
  %581 = vmatpush1.msra.mxu0 0.0
  %582 = vmatprep.subr.mxu0 0.0
  %583 = vmatpush1.msra.mxu0 0.0
  %584 = vmatprep.subr.mxu0 0.0
  %585 = vmatpush1.msra.mxu0 0.0
  %586 = vmatprep.subr.mxu0 0.0
  %587 = vmatpush1.msra.mxu0 0.0
  %588 = vmatprep.subr.mxu0 0.0
  %589 = vmatpush1.msra.mxu0 0.0
  %590 = vmatprep.mubr.f32.mxu0 0.0
  %591 = vmatmul.mubr.f32.gmra.mrb[0].mxu0 %v511
  %v592 = vpop.f32.mrb[0].mxu0
  %v593 = vadd.f32 0.0, %v592
  %v594 = vpop.f32.mrb[0].mxu0
  %v595 = vadd.f32 0.0, %v594
  %596 = vdwg.mxu0
  %597 = vmatprep.subr.mxu0 %v464
  %598 = vmatpush1.msra.mxu0 %v463
  %599 = vmatprep.subr.mxu0 %v469
  %600 = vmatpush1.msra.mxu0 %v468
  %601 = vmatprep.subr.mxu0 %v474
  %602 = vmatpush1.msra.mxu0 %v473
  %603 = vmatprep.subr.mxu0 %v479
  %604 = vmatpush1.msra.mxu0 %v478
  %605 = vmatprep.subr.mxu0 %v520
  %606 = vmatpush1.msra.mxu0 %v518
  %607 = vmatprep.subr.mxu0 0.0
  %608 = vmatpush1.msra.mxu0 0.0
  %609 = vmatprep.subr.mxu0 0.0
  %610 = vmatpush1.msra.mxu0 0.0
  %611 = vmatprep.subr.mxu0 0.0
  %612 = vmatpush1.msra.mxu0 0.0
  %613 = vmatprep.subr.mxu0 0.0
  %614 = vmatpush1.msra.mxu0 0.0
  %615 = vmatprep.subr.mxu0 0.0
  %616 = vmatpush1.msra.mxu0 0.0
  %617 = vmatprep.subr.mxu0 0.0
  %618 = vmatpush1.msra.mxu0 0.0
  %619 = vmatprep.subr.mxu0 0.0
  %620 = vmatpush1.msra.mxu0 0.0
  %621 = vmatprep.subr.mxu0 0.0
  %622 = vmatpush1.msra.mxu0 0.0
  %623 = vmatprep.subr.mxu0 0.0
  %624 = vmatpush1.msra.mxu0 0.0
  %625 = vmatprep.subr.mxu0 0.0
  %626 = vmatpush1.msra.mxu0 0.0
  %627 = vmatprep.subr.mxu0 0.0
  %628 = vmatpush1.msra.mxu0 0.0
  %629 = vmatprep.subr.mxu0 0.0
  %630 = vmatpush1.msra.mxu0 0.0
  %631 = vmatprep.subr.mxu0 0.0
  %632 = vmatpush1.msra.mxu0 0.0
  %633 = vmatprep.subr.mxu0 0.0
  %634 = vmatpush1.msra.mxu0 0.0
  %635 = vmatprep.subr.mxu0 0.0
  %636 = vmatpush1.msra.mxu0 0.0
  %637 = vmatprep.subr.mxu0 0.0
  %638 = vmatpush1.msra.mxu0 0.0
  %639 = vmatprep.subr.mxu0 0.0
  %640 = vmatpush1.msra.mxu0 0.0
  %641 = vmatprep.subr.mxu0 0.0
  %642 = vmatpush1.msra.mxu0 0.0
  %643 = vmatprep.subr.mxu0 0.0
  %644 = vmatpush1.msra.mxu0 0.0
  %645 = vmatprep.subr.mxu0 0.0
  %646 = vmatpush1.msra.mxu0 0.0
  %647 = vmatprep.subr.mxu0 0.0
  %648 = vmatpush1.msra.mxu0 0.0
  %649 = vmatprep.subr.mxu0 0.0
  %650 = vmatpush1.msra.mxu0 0.0
  %651 = vmatprep.subr.mxu0 0.0
  %652 = vmatpush1.msra.mxu0 0.0
  %653 = vmatprep.subr.mxu0 0.0
  %654 = vmatpush1.msra.mxu0 0.0
  %655 = vmatprep.subr.mxu0 0.0
  %656 = vmatpush1.msra.mxu0 0.0
  %657 = vmatprep.subr.mxu0 0.0
  %658 = vmatpush1.msra.mxu0 0.0
  %659 = vmatprep.subr.mxu0 0.0
  %660 = vmatpush1.msra.mxu0 0.0
  %661 = vmatprep.mubr.f32.mxu0 0.0
  %662 = vmatmul.mubr.f32.gmra.mrb[0].mxu0 %v511
  %v663 = vpop.f32.mrb[0].mxu0
  %v664 = vadd.f32 0.0, %v663
  %v665 = vpop.f32.mrb[0].mxu0
  %v666 = vadd.f32 0.0, %v665
  %667 = vdwg.mxu0
  %668 = vmatprep.subr.mxu0 %v411
  %669 = vmatpush1.msra.mxu0 %v465
  %670 = vmatprep.subr.mxu0 %v423
  %671 = vmatpush1.msra.mxu0 %v470
  %672 = vmatprep.subr.mxu0 %v435
  %673 = vmatpush1.msra.mxu0 %v475
  %674 = vmatprep.subr.mxu0 %v447
  %675 = vmatpush1.msra.mxu0 %v480
  %676 = vmatprep.subr.mxu0 %v524
  %677 = vmatpush1.msra.mxu0 %v522
  %678 = vmatprep.subr.mxu0 0.0
  %679 = vmatpush1.msra.mxu0 0.0
  %680 = vmatprep.subr.mxu0 0.0
  %681 = vmatpush1.msra.mxu0 0.0
  %682 = vmatprep.subr.mxu0 0.0
  %683 = vmatpush1.msra.mxu0 0.0
  %684 = vmatprep.subr.mxu0 0.0
  %685 = vmatpush1.msra.mxu0 0.0
  %686 = vmatprep.subr.mxu0 0.0
  %687 = vmatpush1.msra.mxu0 0.0
  %688 = vmatprep.subr.mxu0 0.0
  %689 = vmatpush1.msra.mxu0 0.0
  %690 = vmatprep.subr.mxu0 0.0
  %691 = vmatpush1.msra.mxu0 0.0
  %692 = vmatprep.subr.mxu0 0.0
  %693 = vmatpush1.msra.mxu0 0.0
  %694 = vmatprep.subr.mxu0 0.0
  %695 = vmatpush1.msra.mxu0 0.0
  %696 = vmatprep.subr.mxu0 0.0
  %697 = vmatpush1.msra.mxu0 0.0
  %698 = vmatprep.subr.mxu0 0.0
  %699 = vmatpush1.msra.mxu0 0.0
  %700 = vmatprep.subr.mxu0 0.0
  %701 = vmatpush1.msra.mxu0 0.0
  %702 = vmatprep.subr.mxu0 0.0
  %703 = vmatpush1.msra.mxu0 0.0
  %704 = vmatprep.subr.mxu0 0.0
  %705 = vmatpush1.msra.mxu0 0.0
  %706 = vmatprep.subr.mxu0 0.0
  %707 = vmatpush1.msra.mxu0 0.0
  %708 = vmatprep.subr.mxu0 0.0
  %709 = vmatpush1.msra.mxu0 0.0
  %710 = vmatprep.subr.mxu0 0.0
  %711 = vmatpush1.msra.mxu0 0.0
  %712 = vmatprep.subr.mxu0 0.0
  %713 = vmatpush1.msra.mxu0 0.0
  %714 = vmatprep.subr.mxu0 0.0
  %715 = vmatpush1.msra.mxu0 0.0
  %716 = vmatprep.subr.mxu0 0.0
  %717 = vmatpush1.msra.mxu0 0.0
  %718 = vmatprep.subr.mxu0 0.0
  %719 = vmatpush1.msra.mxu0 0.0
  %720 = vmatprep.subr.mxu0 0.0
  %721 = vmatpush1.msra.mxu0 0.0
  %722 = vmatprep.subr.mxu0 0.0
  %723 = vmatpush1.msra.mxu0 0.0
  %724 = vmatprep.subr.mxu0 0.0
  %725 = vmatpush1.msra.mxu0 0.0
  %726 = vmatprep.subr.mxu0 0.0
  %727 = vmatpush1.msra.mxu0 0.0
  %728 = vmatprep.subr.mxu0 0.0
  %729 = vmatpush1.msra.mxu0 0.0
  %730 = vmatprep.subr.mxu0 0.0
  %731 = vmatpush1.msra.mxu0 0.0
  %732 = vmatprep.mubr.f32.mxu0 0.0
  %733 = vmatmul.mubr.f32.gmra.mrb[0].mxu0 %v511
  %v734 = vpop.f32.mrb[0].mxu0
  %v735 = vadd.f32 0.0, %v734
  %v736 = vpop.f32.mrb[0].mxu0
  %v737 = vadd.f32 0.0, %v736
  %738 = vdwg.mxu0
  %v739 = vld [vmem:[%s3] sm:$0xff]
  %v740 = vld [vmem:[%s4] sm:$0xff]
  %v742 = vlaneseq
  %v743 = vshrl.u32 %v742, 7
  %v744 = vsub.s32 0, %v743
  %v745 = vrot.slane %v29, %v744
  %v746 = vlaneseq
  %v747 = vshrl.u32 %v746, 7
  %v748 = vsub.s32 1, %v747
  %v749 = vrot.slane %v29, %v748
  %v750 = vlaneseq
  %v751 = vshrl.u32 %v750, 7
  %v752 = vsub.s32 2, %v751
  %v753 = vrot.slane %v29, %v752
  %v754 = vlaneseq
  %v755 = vshrl.u32 %v754, 7
  %v756 = vsub.s32 3, %v755
  %v757 = vrot.slane %v29, %v756
  %v758 = vlaneseq
  %v759 = vshrl.u32 %v758, 7
  %v760 = vsub.s32 4, %v759
  %v761 = vrot.slane %v29, %v760
  %v762 = vlaneseq
  %v763 = vshrl.u32 %v762, 7
  %v764 = vsub.s32 5, %v763
  %v765 = vrot.slane %v29, %v764
  %v772 = vmul.f32 %v593, %v745
  %v773 = vmul.f32 %v595, %v749
  %v774 = vmul.f32 %v664, %v753
  %v775 = vmul.f32 %v666, %v757
  %v776 = vmul.f32 %v735, %v761
  %v777 = vmul.f32 %v737, %v765
  %v778 = vadd.f32 %v772, %v773
  %v779 = vadd.f32 %v778, %v774
  %v780 = vadd.f32 %v779, %v775
  %v781 = vadd.f32 %v780, %v776
  %vm782 = vcmask 64512
  %v783 = vsel %vm782, %v777, 0.0
  %v784 = vadd.f32 %v781, %v783
  %785 = vadd.xlane.f32.xlu0 %v784
  %v786 = vpop.xlane.xlu0 %785
  %v787 = vmul.f32 %v786, 0.001953125
  %v788 = vsub.f32 %v593, %v787
  %v789 = vsub.f32 %v595, %v787
  %v790 = vsub.f32 %v664, %v787
  %v791 = vsub.f32 %v666, %v787
  %v792 = vsub.f32 %v735, %v787
  %v793 = vsub.f32 %v737, %v787
  %v794 = vmul.f32 %v788, %v745
  %v795 = vmul.f32 %v789, %v749
  %v796 = vmul.f32 %v790, %v753
  %v797 = vmul.f32 %v791, %v757
  %v798 = vmul.f32 %v792, %v761
  %v799 = vmul.f32 %v793, %v765
  %v800 = vmul.f32 %v794, %v794
  %v801 = vmul.f32 %v795, %v795
  %v802 = vmul.f32 %v796, %v796
  %v803 = vmul.f32 %v797, %v797
  %v804 = vmul.f32 %v798, %v798
  %v805 = vmul.f32 %v799, %v799
  %v806 = vadd.f32 %v800, %v801
  %v807 = vadd.f32 %v806, %v802
  %v808 = vadd.f32 %v807, %v803
  %v809 = vadd.f32 %v808, %v804
  %v810 = vsel %vm782, %v805, 0.0
  %v811 = vadd.f32 %v809, %v810
  %812 = vadd.xlane.f32.xlu0 %v811
  %v813 = vpop.xlane.xlu0 %812
  %v814 = vmul.f32 %v813, 0.001953125
  %v815 = vadd.f32 %v814, 1e-05
  %v816 = vrsqrt.pop %v815
  %v817 = vmul.f32 %v788, %v816
  %v818 = vmul.f32 %v789, %v816
  %v819 = vmul.f32 %v790, %v816
  %v820 = vmul.f32 %v791, %v816
  %v821 = vmul.f32 %v792, %v816
  %v822 = vmul.f32 %v793, %v816
  %824 = vset.pattern.permute.xlu0 0
  %825 = vperm.xlu0 %824, %v739
  %v826 = vpop.permute.xlu0 %825
  %v828 = vmul.f32 %v817, %v826
  %v829 = vmul.f32 %v818, %v826
  %v830 = vmul.f32 %v819, %v826
  %v831 = vmul.f32 %v820, %v826
  %v832 = vmul.f32 %v821, %v826
  %v833 = vmul.f32 %v822, %v826
  %835 = vset.pattern.permute.xlu0 0
  %836 = vperm.xlu0 %835, %v740
  %v837 = vpop.permute.xlu0 %836
  %v839 = vadd.f32 %v828, %v837
  %v840 = vadd.f32 %v829, %v837
  %v841 = vadd.f32 %v830, %v837
  %v842 = vadd.f32 %v831, %v837
  %v843 = vadd.f32 %v832, %v837
  %v844 = vadd.f32 %v833, %v837
  %v845 = vxor.u32 %v839, 2147483648
  %v846 = vxor.u32 %v840, 2147483648
  %v847 = vxor.u32 %v841, 2147483648
  %v848 = vxor.u32 %v842, 2147483648
  %v849 = vxor.u32 %v843, 2147483648
  %v850 = vxor.u32 %v844, 2147483648
  %v851 = vmul.f32 %v845, 1.442695
  %v852 = vpow.pop %v851
  %v853 = vmul.f32 %v846, 1.442695
  %v854 = vpow.pop %v853
  %v855 = vmul.f32 %v847, 1.442695
  %v856 = vpow.pop %v855
  %v857 = vmul.f32 %v848, 1.442695
  %v858 = vpow.pop %v857
  %v859 = vmul.f32 %v849, 1.442695
  %v860 = vpow.pop %v859
  %v861 = vmul.f32 %v850, 1.442695
  %v862 = vpow.pop %v861
  %v863 = vadd.f32 %v852, 1.0
  %v864 = vadd.f32 %v854, 1.0
  %v865 = vadd.f32 %v856, 1.0
  %v866 = vadd.f32 %v858, 1.0
  %v867 = vadd.f32 %v860, 1.0
  %v868 = vadd.f32 %v862, 1.0
  %v869 = vrcp.pop %v863
  %v870 = vmul.f32 1.0, %v869
  %v871 = vrcp.pop %v864
  %v872 = vmul.f32 1.0, %v871
  %v873 = vrcp.pop %v865
  %v874 = vmul.f32 1.0, %v873
  %v875 = vrcp.pop %v866
  %v876 = vmul.f32 1.0, %v875
  %v877 = vrcp.pop %v867
  %v878 = vmul.f32 1.0, %v877
  %v879 = vrcp.pop %v868
  %v880 = vmul.f32 1.0, %v879
  %v887 = vrot.slane %v870, 4
  %v888 = vrot.slane %v872, 4
  %v889 = vrot.slane %v874, 4
  %v890 = vrot.slane %v876, 4
  %v891 = vrot.slane %v878, 4
  %v892 = vrot.slane %v880, 4
  %v899 = vmul.f32 %v839, %v887
  %v900 = vmul.f32 %v840, %v888
  %v901 = vmul.f32 %v841, %v889
  %v902 = vmul.f32 %v842, %v890
  %v903 = vmul.f32 %v843, %v891
  %v904 = vmul.f32 %v844, %v892
  %v905 = vmul.f32 %v899, %v745
  %v906 = vmul.f32 %v900, %v749
  %v907 = vmul.f32 %v901, %v753
  %v908 = vmul.f32 %v902, %v757
  %v909 = vmul.f32 %v903, %v761
  %v910 = vmul.f32 %v904, %v765
  %917 = vrot.lane.b32.xlu0 %v905, 38
  %v918 = vpop.permute.xlu0 %917
  %919 = vrot.lane.b32.xlu0 %v906, 38
  %v920 = vpop.permute.xlu0 %919
  %921 = vrot.lane.b32.xlu0 %v907, 38
  %v922 = vpop.permute.xlu0 %921
  %923 = vrot.lane.b32.xlu0 %v908, 38
  %v924 = vpop.permute.xlu0 %923
  %925 = vrot.lane.b32.xlu0 %v909, 38
  %v926 = vpop.permute.xlu0 %925
  %927 = vrot.lane.b32.xlu0 %v910, 38
  %v928 = vpop.permute.xlu0 %927
  %v929 = vsel %vm83, %v918, %v920
  %v930 = vsel %vm83, %v920, %v922
  %v931 = vsel %vm83, %v922, %v924
  %v932 = vsel %vm83, %v924, %v926
  %v933 = vsel %vm83, %v926, %v928
  %940 = vst.msk [vmem:[#allocation2] sm:$0xf] %vm95, %v918
  %941 = vst [vmem:[#allocation2 + $0x8] sm:$0xf] %v929
  %942 = vst [vmem:[#allocation2 + $0x10] sm:$0xf] %v930
  %943 = vst [vmem:[#allocation2 + $0x18] sm:$0xf] %v931
  %944 = vst [vmem:[#allocation2 + $0x20] sm:$0xf] %v932
  %945 = vst.msk [vmem:[#allocation2 + $0x28] sm:$0xf] %vm60, %v933
  %v946 = vrot.slane %v905, 4
  %v947 = vrot.slane %v906, 4
  %v948 = vrot.slane %v907, 4
  %v949 = vrot.slane %v908, 4
  %v950 = vrot.slane %v909, 4
  %v951 = vrot.slane %v910, 4
  %952 = vrot.lane.b32.xlu0 %v946, 37
  %v953 = vpop.permute.xlu0 %952
  %954 = vrot.lane.b32.xlu0 %v947, 37
  %v955 = vpop.permute.xlu0 %954
  %956 = vrot.lane.b32.xlu0 %v948, 37
  %v957 = vpop.permute.xlu0 %956
  %958 = vrot.lane.b32.xlu0 %v949, 37
  %v959 = vpop.permute.xlu0 %958
  %960 = vrot.lane.b32.xlu0 %v950, 37
  %v961 = vpop.permute.xlu0 %960
  %962 = vrot.lane.b32.xlu0 %v951, 37
  %v963 = vpop.permute.xlu0 %962
  %v964 = vsel %vm117, %v953, %v955
  %v965 = vsel %vm117, %v955, %v957
  %v966 = vsel %vm117, %v957, %v959
  %v967 = vsel %vm117, %v959, %v961
  %v968 = vsel %vm117, %v961, %v963
  %975 = vst.msk [vmem:[#allocation2] sm:$0xf0] %vm129, %v953
  %976 = vst [vmem:[#allocation2 + $0x8] sm:$0xf0] %v964
  %977 = vst [vmem:[#allocation2 + $0x10] sm:$0xf0] %v965
  %978 = vst [vmem:[#allocation2 + $0x18] sm:$0xf0] %v966
  %979 = vst [vmem:[#allocation2 + $0x20] sm:$0xf0] %v967
  %980 = vst.msk [vmem:[#allocation2 + $0x28] sm:$0xf0] %vm135, %v968
  %981 = vrot.lane.b32.xlu0 %v905, 36
  %v982 = vpop.permute.xlu0 %981
  %983 = vrot.lane.b32.xlu0 %v906, 36
  %v984 = vpop.permute.xlu0 %983
  %985 = vrot.lane.b32.xlu0 %v907, 36
  %v986 = vpop.permute.xlu0 %985
  %987 = vrot.lane.b32.xlu0 %v908, 36
  %v988 = vpop.permute.xlu0 %987
  %989 = vrot.lane.b32.xlu0 %v909, 36
  %v990 = vpop.permute.xlu0 %989
  %991 = vrot.lane.b32.xlu0 %v910, 36
  %v992 = vpop.permute.xlu0 %991
  %v993 = vsel %vm149, %v982, %v984
  %v994 = vsel %vm149, %v984, %v986
  %v995 = vsel %vm149, %v986, %v988
  %v996 = vsel %vm149, %v988, %v990
  %v997 = vsel %vm149, %v990, %v992
  %1004 = vst.msk [vmem:[#allocation2 + $0x30] sm:$0xf] %vm161, %v982
  %1005 = vst [vmem:[#allocation2 + $0x38] sm:$0xf] %v993
  %1006 = vst [vmem:[#allocation2 + $0x40] sm:$0xf] %v994
  %1007 = vst [vmem:[#allocation2 + $0x48] sm:$0xf] %v995
  %1008 = vst [vmem:[#allocation2 + $0x50] sm:$0xf] %v996
  %1009 = vst.msk [vmem:[#allocation2 + $0x58] sm:$0xf] %vm167, %v997
  %1010 = vrot.lane.b32.xlu0 %v946, 20
  %v1011 = vpop.permute.xlu0 %1010
  %1012 = vrot.lane.b32.xlu0 %v947, 20
  %v1013 = vpop.permute.xlu0 %1012
  %1014 = vrot.lane.b32.xlu0 %v948, 20
  %v1015 = vpop.permute.xlu0 %1014
  %1016 = vrot.lane.b32.xlu0 %v949, 20
  %v1017 = vpop.permute.xlu0 %1016
  %1018 = vrot.lane.b32.xlu0 %v950, 20
  %v1019 = vpop.permute.xlu0 %1018
  %1020 = vrot.lane.b32.xlu0 %v951, 20
  %v1021 = vpop.permute.xlu0 %1020
  %v1022 = vsel %vm181, %v1011, %v1013
  %v1023 = vsel %vm181, %v1013, %v1015
  %v1024 = vsel %vm181, %v1015, %v1017
  %v1025 = vsel %vm181, %v1017, %v1019
  %v1026 = vsel %vm181, %v1019, %v1021
  %1033 = vst.msk [vmem:[#allocation2 + $0x30] sm:$0xf0] %vm193, %v1011
  %1034 = vst [vmem:[#allocation2 + $0x38] sm:$0xf0] %v1022
  %1035 = vst [vmem:[#allocation2 + $0x40] sm:$0xf0] %v1023
  %1036 = vst [vmem:[#allocation2 + $0x48] sm:$0xf0] %v1024
  %1037 = vst [vmem:[#allocation2 + $0x50] sm:$0xf0] %v1025
  %1038 = vst.msk [vmem:[#allocation2 + $0x58] sm:$0xf0] %vm199, %v1026
  %1039 = vrot.lane.b32.xlu0 %v905, 19
  %v1040 = vpop.permute.xlu0 %1039
  %1041 = vrot.lane.b32.xlu0 %v906, 19
  %v1042 = vpop.permute.xlu0 %1041
  %1043 = vrot.lane.b32.xlu0 %v907, 19
  %v1044 = vpop.permute.xlu0 %1043
  %1045 = vrot.lane.b32.xlu0 %v908, 19
  %v1046 = vpop.permute.xlu0 %1045
  %1047 = vrot.lane.b32.xlu0 %v909, 19
  %v1048 = vpop.permute.xlu0 %1047
  %1049 = vrot.lane.b32.xlu0 %v910, 19
  %v1050 = vpop.permute.xlu0 %1049
  %v1051 = vsel %vm213, %v1040, %v1042
  %v1052 = vsel %vm213, %v1042, %v1044
  %v1053 = vsel %vm213, %v1044, %v1046
  %v1054 = vsel %vm213, %v1046, %v1048
  %v1055 = vsel %vm213, %v1048, %v1050
  %1062 = vst.msk [vmem:[#allocation2 + $0x60] sm:$0xf] %vm225, %v1040
  %1063 = vst [vmem:[#allocation2 + $0x68] sm:$0xf] %v1051
  %1064 = vst [vmem:[#allocation2 + $0x70] sm:$0xf] %v1052
  %1065 = vst [vmem:[#allocation2 + $0x78] sm:$0xf] %v1053
  %1066 = vst [vmem:[#allocation2 + $0x80] sm:$0xf] %v1054
  %1067 = vst.msk [vmem:[#allocation2 + $0x88] sm:$0xf] %vm231, %v1055
  %1068 = vrot.lane.b32.xlu0 %v946, 18
  %v1069 = vpop.permute.xlu0 %1068
  %1070 = vrot.lane.b32.xlu0 %v947, 18
  %v1071 = vpop.permute.xlu0 %1070
  %1072 = vrot.lane.b32.xlu0 %v948, 18
  %v1073 = vpop.permute.xlu0 %1072
  %1074 = vrot.lane.b32.xlu0 %v949, 18
  %v1075 = vpop.permute.xlu0 %1074
  %1076 = vrot.lane.b32.xlu0 %v950, 18
  %v1077 = vpop.permute.xlu0 %1076
  %1078 = vrot.lane.b32.xlu0 %v951, 18
  %v1079 = vpop.permute.xlu0 %1078
  %v1080 = vsel %vm245, %v1069, %v1071
  %v1081 = vsel %vm245, %v1071, %v1073
  %v1082 = vsel %vm245, %v1073, %v1075
  %v1083 = vsel %vm245, %v1075, %v1077
  %v1084 = vsel %vm245, %v1077, %v1079
  %1091 = vst.msk [vmem:[#allocation2 + $0x60] sm:$0xf0] %vm257, %v1069
  %1092 = vst [vmem:[#allocation2 + $0x68] sm:$0xf0] %v1080
  %1093 = vst [vmem:[#allocation2 + $0x70] sm:$0xf0] %v1081
  %1094 = vst [vmem:[#allocation2 + $0x78] sm:$0xf0] %v1082
  %1095 = vst [vmem:[#allocation2 + $0x80] sm:$0xf0] %v1083
  %1096 = vst.msk [vmem:[#allocation2 + $0x88] sm:$0xf0] %vm263, %v1084
  %1097 = vrot.lane.b32.xlu0 %v905, 2
  %v1098 = vpop.permute.xlu0 %1097
  %1099 = vrot.lane.b32.xlu0 %v906, 2
  %v1100 = vpop.permute.xlu0 %1099
  %1101 = vrot.lane.b32.xlu0 %v907, 2
  %v1102 = vpop.permute.xlu0 %1101
  %1103 = vrot.lane.b32.xlu0 %v908, 2
  %v1104 = vpop.permute.xlu0 %1103
  %1105 = vrot.lane.b32.xlu0 %v909, 2
  %v1106 = vpop.permute.xlu0 %1105
  %1107 = vrot.lane.b32.xlu0 %v910, 2
  %v1108 = vpop.permute.xlu0 %1107
  %v1109 = vsel %vm277, %v1098, %v1100
  %v1110 = vsel %vm277, %v1100, %v1102
  %v1111 = vsel %vm277, %v1102, %v1104
  %v1112 = vsel %vm277, %v1104, %v1106
  %v1113 = vsel %vm277, %v1106, %v1108
  %1120 = vst.msk [vmem:[#allocation2 + $0x90] sm:$0xf] %vm289, %v1098
  %1121 = vst [vmem:[#allocation2 + $0x98] sm:$0xf] %v1109
  %1122 = vst [vmem:[#allocation2 + $0xa0] sm:$0xf] %v1110
  %1123 = vst [vmem:[#allocation2 + $0xa8] sm:$0xf] %v1111
  %1124 = vst [vmem:[#allocation2 + $0xb0] sm:$0xf] %v1112
  %1125 = vst.msk [vmem:[#allocation2 + $0xb8] sm:$0xf] %vm295, %v1113
  %1126 = vrot.lane.b32.xlu0 %v946, 1
  %v1127 = vpop.permute.xlu0 %1126
  %1128 = vrot.lane.b32.xlu0 %v947, 1
  %v1129 = vpop.permute.xlu0 %1128
  %1130 = vrot.lane.b32.xlu0 %v948, 1
  %v1131 = vpop.permute.xlu0 %1130
  %1132 = vrot.lane.b32.xlu0 %v949, 1
  %v1133 = vpop.permute.xlu0 %1132
  %1134 = vrot.lane.b32.xlu0 %v950, 1
  %v1135 = vpop.permute.xlu0 %1134
  %1136 = vrot.lane.b32.xlu0 %v951, 1
  %v1137 = vpop.permute.xlu0 %1136
  %v1138 = vsel %vm309, %v1127, %v1129
  %v1139 = vsel %vm309, %v1129, %v1131
  %v1140 = vsel %vm309, %v1131, %v1133
  %v1141 = vsel %vm309, %v1133, %v1135
  %v1142 = vsel %vm309, %v1135, %v1137
  %1149 = vst.msk [vmem:[#allocation2 + $0x90] sm:$0xf0] %vm321, %v1127
  %1150 = vst [vmem:[#allocation2 + $0x98] sm:$0xf0] %v1138
  %1151 = vst [vmem:[#allocation2 + $0xa0] sm:$0xf0] %v1139
  %1152 = vst [vmem:[#allocation2 + $0xa8] sm:$0xf0] %v1140
  %1153 = vst [vmem:[#allocation2 + $0xb0] sm:$0xf0] %v1141
  %1154 = vst.msk [vmem:[#allocation2 + $0xb8] sm:$0xf0] %vm327, %v1142
  %1155 = vst [vmem:[#allocation2 + $0xc0] sm:$0xf] %v905
  %1156 = vst [vmem:[#allocation2 + $0xc8] sm:$0xf] %v906
  %1157 = vst [vmem:[#allocation2 + $0xd0] sm:$0xf] %v907
  %1158 = vst [vmem:[#allocation2 + $0xd8] sm:$0xf] %v908
  %1159 = vst [vmem:[#allocation2 + $0xe0] sm:$0xf] %v909
  %1160 = vst.msk [vmem:[#allocation2 + $0xe8] sm:$0xf] %vm337, %v910
  %v1161 = vld [vmem:[%s5] sm:$0xf]
  %v1162 = vld [vmem:[#allocation2] sm:$0xff]
  %v1163 = vld [vmem:[#allocation2 + $0x8] sm:$0xff]
  %v1164 = vld [vmem:[#allocation2 + $0x10] sm:$0xff]
  %v1165 = vld [vmem:[#allocation2 + $0x18] sm:$0xff]
  %v1166 = vld [vmem:[#allocation2 + $0x20] sm:$0xff]
  %v1167 = vld [vmem:[#allocation2 + $0x28] sm:$0xff]
  %v1168 = vld [vmem:[#allocation2 + $0x30] sm:$0xff]
  %v1169 = vld [vmem:[#allocation2 + $0x38] sm:$0xff]
  %v1170 = vld [vmem:[#allocation2 + $0x40] sm:$0xff]
  %v1171 = vld [vmem:[#allocation2 + $0x48] sm:$0xff]
  %v1172 = vld [vmem:[#allocation2 + $0x50] sm:$0xff]
  %v1173 = vld [vmem:[#allocation2 + $0x58] sm:$0xff]
  %v1174 = vld [vmem:[#allocation2 + $0x60] sm:$0xff]
  %v1175 = vld [vmem:[#allocation2 + $0x68] sm:$0xff]
  %v1176 = vld [vmem:[#allocation2 + $0x70] sm:$0xff]
  %v1177 = vld [vmem:[#allocation2 + $0x78] sm:$0xff]
  %v1178 = vld [vmem:[#allocation2 + $0x80] sm:$0xff]
  %v1179 = vld [vmem:[#allocation2 + $0x88] sm:$0xff]
  %v1180 = vld [vmem:[#allocation2 + $0x90] sm:$0xff]
  %v1181 = vld [vmem:[#allocation2 + $0x98] sm:$0xff]
  %v1182 = vld [vmem:[#allocation2 + $0xa0] sm:$0xff]
  %v1183 = vld [vmem:[#allocation2 + $0xa8] sm:$0xff]
  %v1184 = vld [vmem:[#allocation2 + $0xb0] sm:$0xff]
  %v1185 = vld [vmem:[#allocation2 + $0xb8] sm:$0xff]
  %v1186 = vld [vmem:[#allocation2 + $0xc0] sm:$0xf]
  %v1187 = vld [vmem:[#allocation2 + $0xc8] sm:$0xf]
  %v1188 = vld [vmem:[#allocation2 + $0xd0] sm:$0xf]
  %v1189 = vld [vmem:[#allocation2 + $0xd8] sm:$0xf]
  %v1190 = vld [vmem:[#allocation2 + $0xe0] sm:$0xf]
  %v1191 = vld [vmem:[#allocation2 + $0xe8] sm:$0xf]
  %1222 = vrot.lane.b32.xlu0 %v1162, 109
  %v1223 = vpop.permute.xlu0 %1222
  %1224 = vrot.lane.b32.xlu0 %v1163, 109
  %v1225 = vpop.permute.xlu0 %1224
  %1226 = vrot.lane.b32.xlu0 %v1164, 109
  %v1227 = vpop.permute.xlu0 %1226
  %1228 = vrot.lane.b32.xlu0 %v1165, 109
  %v1229 = vpop.permute.xlu0 %1228
  %1230 = vrot.lane.b32.xlu0 %v1166, 109
  %v1231 = vpop.permute.xlu0 %1230
  %1232 = vrot.lane.b32.xlu0 %v1167, 109
  %v1233 = vpop.permute.xlu0 %1232
  %1234 = vrot.lane.b32.xlu0 %v1168, 109
  %v1235 = vpop.permute.xlu0 %1234
  %1236 = vrot.lane.b32.xlu0 %v1169, 109
  %v1237 = vpop.permute.xlu0 %1236
  %1238 = vrot.lane.b32.xlu0 %v1170, 109
  %v1239 = vpop.permute.xlu0 %1238
  %1240 = vrot.lane.b32.xlu0 %v1171, 109
  %v1241 = vpop.permute.xlu0 %1240
  %1242 = vrot.lane.b32.xlu0 %v1172, 109
  %v1243 = vpop.permute.xlu0 %1242
  %1244 = vrot.lane.b32.xlu0 %v1173, 109
  %v1245 = vpop.permute.xlu0 %1244
  %1246 = vrot.lane.b32.xlu0 %v1174, 109
  %v1247 = vpop.permute.xlu0 %1246
  %1248 = vrot.lane.b32.xlu0 %v1175, 109
  %v1249 = vpop.permute.xlu0 %1248
  %1250 = vrot.lane.b32.xlu0 %v1176, 109
  %v1251 = vpop.permute.xlu0 %1250
  %1252 = vrot.lane.b32.xlu0 %v1177, 109
  %v1253 = vpop.permute.xlu0 %1252
  %1254 = vrot.lane.b32.xlu0 %v1178, 109
  %v1255 = vpop.permute.xlu0 %1254
  %1256 = vrot.lane.b32.xlu0 %v1179, 109
  %v1257 = vpop.permute.xlu0 %1256
  %1258 = vrot.lane.b32.xlu0 %v1180, 109
  %v1259 = vpop.permute.xlu0 %1258
  %1260 = vrot.lane.b32.xlu0 %v1181, 109
  %v1261 = vpop.permute.xlu0 %1260
  %1262 = vrot.lane.b32.xlu0 %v1182, 109
  %v1263 = vpop.permute.xlu0 %1262
  %1264 = vrot.lane.b32.xlu0 %v1183, 109
  %v1265 = vpop.permute.xlu0 %1264
  %1266 = vrot.lane.b32.xlu0 %v1184, 109
  %v1267 = vpop.permute.xlu0 %1266
  %1268 = vrot.lane.b32.xlu0 %v1185, 109
  %v1269 = vpop.permute.xlu0 %1268
  %1270 = vrot.lane.b32.xlu0 %v1186, 109
  %v1271 = vpop.permute.xlu0 %1270
  %1272 = vrot.lane.b32.xlu0 %v1187, 109
  %v1273 = vpop.permute.xlu0 %1272
  %1274 = vrot.lane.b32.xlu0 %v1188, 109
  %v1275 = vpop.permute.xlu0 %1274
  %1276 = vrot.lane.b32.xlu0 %v1189, 109
  %v1277 = vpop.permute.xlu0 %1276
  %1278 = vrot.lane.b32.xlu0 %v1190, 109
  %v1279 = vpop.permute.xlu0 %1278
  %1280 = vrot.lane.b32.xlu0 %v1191, 109
  %v1281 = vpop.permute.xlu0 %1280
  %v1282 = vsel %vm460, %v1223, %v1225
  %v1283 = vsel %vm460, %v1225, %v1227
  %v1284 = vsel %vm460, %v1227, %v1229
  %v1285 = vsel %vm460, %v1229, %v1231
  %v1286 = vsel %vm460, %v1231, %v1233
  %v1287 = vsel %vm460, %v1235, %v1237
  %v1288 = vsel %vm460, %v1237, %v1239
  %v1289 = vsel %vm460, %v1239, %v1241
  %v1290 = vsel %vm460, %v1241, %v1243
  %v1291 = vsel %vm460, %v1243, %v1245
  %v1292 = vsel %vm460, %v1247, %v1249
  %v1293 = vsel %vm460, %v1249, %v1251
  %v1294 = vsel %vm460, %v1251, %v1253
  %v1295 = vsel %vm460, %v1253, %v1255
  %v1296 = vsel %vm460, %v1255, %v1257
  %v1297 = vsel %vm460, %v1259, %v1261
  %v1298 = vsel %vm460, %v1261, %v1263
  %v1299 = vsel %vm460, %v1263, %v1265
  %v1300 = vsel %vm460, %v1265, %v1267
  %v1301 = vsel %vm460, %v1267, %v1269
  %v1302 = vsel %vm460, %v1271, %v1273
  %v1303 = vsel %vm460, %v1273, %v1275
  %v1304 = vsel %vm460, %v1275, %v1277
  %v1305 = vsel %vm460, %v1277, %v1279
  %v1306 = vsel %vm460, %v1279, %v1281
  %v1332 = vsel %vm149, %v1161, 0
  %v1334 = vsel %vm513, %v1302, 0
  %v1336 = vsel %vm513, %v1303, 0
  %v1338 = vsel %vm513, %v1304, 0
  %v1340 = vsel %vm513, %v1305, 0
  %v1342 = vsel %vm513, %v1306, 0
  %v1344 = vsel %vm513, %v1281, 0
  %1346 = vmatprep.subr.mxu0 %v1283
  %1347 = vmatpush1.msra.mxu0 %v1282
  %1348 = vmatprep.subr.mxu0 %v1288
  %1349 = vmatpush1.msra.mxu0 %v1287
  %1350 = vmatprep.subr.mxu0 %v1293
  %1351 = vmatpush1.msra.mxu0 %v1292
  %1352 = vmatprep.subr.mxu0 %v1298
  %1353 = vmatpush1.msra.mxu0 %v1297
  %1354 = vmatprep.subr.mxu0 %v1336
  %1355 = vmatpush1.msra.mxu0 %v1334
  %1356 = vmatprep.subr.mxu0 0.0
  %1357 = vmatpush1.msra.mxu0 0.0
  %1358 = vmatprep.subr.mxu0 0.0
  %1359 = vmatpush1.msra.mxu0 0.0
  %1360 = vmatprep.subr.mxu0 0.0
  %1361 = vmatpush1.msra.mxu0 0.0
  %1362 = vmatprep.subr.mxu0 0.0
  %1363 = vmatpush1.msra.mxu0 0.0
  %1364 = vmatprep.subr.mxu0 0.0
  %1365 = vmatpush1.msra.mxu0 0.0
  %1366 = vmatprep.subr.mxu0 0.0
  %1367 = vmatpush1.msra.mxu0 0.0
  %1368 = vmatprep.subr.mxu0 0.0
  %1369 = vmatpush1.msra.mxu0 0.0
  %1370 = vmatprep.subr.mxu0 0.0
  %1371 = vmatpush1.msra.mxu0 0.0
  %1372 = vmatprep.subr.mxu0 0.0
  %1373 = vmatpush1.msra.mxu0 0.0
  %1374 = vmatprep.subr.mxu0 0.0
  %1375 = vmatpush1.msra.mxu0 0.0
  %1376 = vmatprep.subr.mxu0 0.0
  %1377 = vmatpush1.msra.mxu0 0.0
  %1378 = vmatprep.subr.mxu0 0.0
  %1379 = vmatpush1.msra.mxu0 0.0
  %1380 = vmatprep.subr.mxu0 0.0
  %1381 = vmatpush1.msra.mxu0 0.0
  %1382 = vmatprep.subr.mxu0 0.0
  %1383 = vmatpush1.msra.mxu0 0.0
  %1384 = vmatprep.subr.mxu0 0.0
  %1385 = vmatpush1.msra.mxu0 0.0
  %1386 = vmatprep.subr.mxu0 0.0
  %1387 = vmatpush1.msra.mxu0 0.0
  %1388 = vmatprep.subr.mxu0 0.0
  %1389 = vmatpush1.msra.mxu0 0.0
  %1390 = vmatprep.subr.mxu0 0.0
  %1391 = vmatpush1.msra.mxu0 0.0
  %1392 = vmatprep.subr.mxu0 0.0
  %1393 = vmatpush1.msra.mxu0 0.0
  %1394 = vmatprep.subr.mxu0 0.0
  %1395 = vmatpush1.msra.mxu0 0.0
  %1396 = vmatprep.subr.mxu0 0.0
  %1397 = vmatpush1.msra.mxu0 0.0
  %1398 = vmatprep.subr.mxu0 0.0
  %1399 = vmatpush1.msra.mxu0 0.0
  %1400 = vmatprep.subr.mxu0 0.0
  %1401 = vmatpush1.msra.mxu0 0.0
  %1402 = vmatprep.subr.mxu0 0.0
  %1403 = vmatpush1.msra.mxu0 0.0
  %1404 = vmatprep.subr.mxu0 0.0
  %1405 = vmatpush1.msra.mxu0 0.0
  %1406 = vmatprep.subr.mxu0 0.0
  %1407 = vmatpush1.msra.mxu0 0.0
  %1408 = vmatprep.subr.mxu0 0.0
  %1409 = vmatpush1.msra.mxu0 0.0
  %1410 = vmatprep.mubr.f32.mxu0 0.0
  %1411 = vmatmul.mubr.f32.gmra.mrb[0].mxu0 %v1332
  %v1412 = vpop.f32.mrb[0].mxu0
  %v1413 = vadd.f32 0.0, %v1412
  %v1414 = vpop.f32.mrb[0].mxu0
  %v1415 = vadd.f32 0.0, %v1414
  %1416 = vdwg.mxu0
  %1417 = vmatprep.subr.mxu0 %v1285
  %1418 = vmatpush1.msra.mxu0 %v1284
  %1419 = vmatprep.subr.mxu0 %v1290
  %1420 = vmatpush1.msra.mxu0 %v1289
  %1421 = vmatprep.subr.mxu0 %v1295
  %1422 = vmatpush1.msra.mxu0 %v1294
  %1423 = vmatprep.subr.mxu0 %v1300
  %1424 = vmatpush1.msra.mxu0 %v1299
  %1425 = vmatprep.subr.mxu0 %v1340
  %1426 = vmatpush1.msra.mxu0 %v1338
  %1427 = vmatprep.subr.mxu0 0.0
  %1428 = vmatpush1.msra.mxu0 0.0
  %1429 = vmatprep.subr.mxu0 0.0
  %1430 = vmatpush1.msra.mxu0 0.0
  %1431 = vmatprep.subr.mxu0 0.0
  %1432 = vmatpush1.msra.mxu0 0.0
  %1433 = vmatprep.subr.mxu0 0.0
  %1434 = vmatpush1.msra.mxu0 0.0
  %1435 = vmatprep.subr.mxu0 0.0
  %1436 = vmatpush1.msra.mxu0 0.0
  %1437 = vmatprep.subr.mxu0 0.0
  %1438 = vmatpush1.msra.mxu0 0.0
  %1439 = vmatprep.subr.mxu0 0.0
  %1440 = vmatpush1.msra.mxu0 0.0
  %1441 = vmatprep.subr.mxu0 0.0
  %1442 = vmatpush1.msra.mxu0 0.0
  %1443 = vmatprep.subr.mxu0 0.0
  %1444 = vmatpush1.msra.mxu0 0.0
  %1445 = vmatprep.subr.mxu0 0.0
  %1446 = vmatpush1.msra.mxu0 0.0
  %1447 = vmatprep.subr.mxu0 0.0
  %1448 = vmatpush1.msra.mxu0 0.0
  %1449 = vmatprep.subr.mxu0 0.0
  %1450 = vmatpush1.msra.mxu0 0.0
  %1451 = vmatprep.subr.mxu0 0.0
  %1452 = vmatpush1.msra.mxu0 0.0
  %1453 = vmatprep.subr.mxu0 0.0
  %1454 = vmatpush1.msra.mxu0 0.0
  %1455 = vmatprep.subr.mxu0 0.0
  %1456 = vmatpush1.msra.mxu0 0.0
  %1457 = vmatprep.subr.mxu0 0.0
  %1458 = vmatpush1.msra.mxu0 0.0
  %1459 = vmatprep.subr.mxu0 0.0
  %1460 = vmatpush1.msra.mxu0 0.0
  %1461 = vmatprep.subr.mxu0 0.0
  %1462 = vmatpush1.msra.mxu0 0.0
  %1463 = vmatprep.subr.mxu0 0.0
  %1464 = vmatpush1.msra.mxu0 0.0
  %1465 = vmatprep.subr.mxu0 0.0
  %1466 = vmatpush1.msra.mxu0 0.0
  %1467 = vmatprep.subr.mxu0 0.0
  %1468 = vmatpush1.msra.mxu0 0.0
  %1469 = vmatprep.subr.mxu0 0.0
  %1470 = vmatpush1.msra.mxu0 0.0
  %1471 = vmatprep.subr.mxu0 0.0
  %1472 = vmatpush1.msra.mxu0 0.0
  %1473 = vmatprep.subr.mxu0 0.0
  %1474 = vmatpush1.msra.mxu0 0.0
  %1475 = vmatprep.subr.mxu0 0.0
  %1476 = vmatpush1.msra.mxu0 0.0
  %1477 = vmatprep.subr.mxu0 0.0
  %1478 = vmatpush1.msra.mxu0 0.0
  %1479 = vmatprep.subr.mxu0 0.0
  %1480 = vmatpush1.msra.mxu0 0.0
  %1481 = vmatprep.mubr.f32.mxu0 0.0
  %1482 = vmatmul.mubr.f32.gmra.mrb[0].mxu0 %v1332
  %v1483 = vpop.f32.mrb[0].mxu0
  %v1484 = vadd.f32 0.0, %v1483
  %v1485 = vpop.f32.mrb[0].mxu0
  %v1486 = vadd.f32 0.0, %v1485
  %1487 = vdwg.mxu0
  %1488 = vmatprep.subr.mxu0 %v1233
  %1489 = vmatpush1.msra.mxu0 %v1286
  %1490 = vmatprep.subr.mxu0 %v1245
  %1491 = vmatpush1.msra.mxu0 %v1291
  %1492 = vmatprep.subr.mxu0 %v1257
  %1493 = vmatpush1.msra.mxu0 %v1296
  %1494 = vmatprep.subr.mxu0 %v1269
  %1495 = vmatpush1.msra.mxu0 %v1301
  %1496 = vmatprep.subr.mxu0 %v1344
  %1497 = vmatpush1.msra.mxu0 %v1342
  %1498 = vmatprep.subr.mxu0 0.0
  %1499 = vmatpush1.msra.mxu0 0.0
  %1500 = vmatprep.subr.mxu0 0.0
  %1501 = vmatpush1.msra.mxu0 0.0
  %1502 = vmatprep.subr.mxu0 0.0
  %1503 = vmatpush1.msra.mxu0 0.0
  %1504 = vmatprep.subr.mxu0 0.0
  %1505 = vmatpush1.msra.mxu0 0.0
  %1506 = vmatprep.subr.mxu0 0.0
  %1507 = vmatpush1.msra.mxu0 0.0
  %1508 = vmatprep.subr.mxu0 0.0
  %1509 = vmatpush1.msra.mxu0 0.0
  %1510 = vmatprep.subr.mxu0 0.0
  %1511 = vmatpush1.msra.mxu0 0.0
  %1512 = vmatprep.subr.mxu0 0.0
  %1513 = vmatpush1.msra.mxu0 0.0
  %1514 = vmatprep.subr.mxu0 0.0
  %1515 = vmatpush1.msra.mxu0 0.0
  %1516 = vmatprep.subr.mxu0 0.0
  %1517 = vmatpush1.msra.mxu0 0.0
  %1518 = vmatprep.subr.mxu0 0.0
  %1519 = vmatpush1.msra.mxu0 0.0
  %1520 = vmatprep.subr.mxu0 0.0
  %1521 = vmatpush1.msra.mxu0 0.0
  %1522 = vmatprep.subr.mxu0 0.0
  %1523 = vmatpush1.msra.mxu0 0.0
  %1524 = vmatprep.subr.mxu0 0.0
  %1525 = vmatpush1.msra.mxu0 0.0
  %1526 = vmatprep.subr.mxu0 0.0
  %1527 = vmatpush1.msra.mxu0 0.0
  %1528 = vmatprep.subr.mxu0 0.0
  %1529 = vmatpush1.msra.mxu0 0.0
  %1530 = vmatprep.subr.mxu0 0.0
  %1531 = vmatpush1.msra.mxu0 0.0
  %1532 = vmatprep.subr.mxu0 0.0
  %1533 = vmatpush1.msra.mxu0 0.0
  %1534 = vmatprep.subr.mxu0 0.0
  %1535 = vmatpush1.msra.mxu0 0.0
  %1536 = vmatprep.subr.mxu0 0.0
  %1537 = vmatpush1.msra.mxu0 0.0
  %1538 = vmatprep.subr.mxu0 0.0
  %1539 = vmatpush1.msra.mxu0 0.0
  %1540 = vmatprep.subr.mxu0 0.0
  %1541 = vmatpush1.msra.mxu0 0.0
  %1542 = vmatprep.subr.mxu0 0.0
  %1543 = vmatpush1.msra.mxu0 0.0
  %1544 = vmatprep.subr.mxu0 0.0
  %1545 = vmatpush1.msra.mxu0 0.0
  %1546 = vmatprep.subr.mxu0 0.0
  %1547 = vmatpush1.msra.mxu0 0.0
  %1548 = vmatprep.subr.mxu0 0.0
  %1549 = vmatpush1.msra.mxu0 0.0
  %1550 = vmatprep.subr.mxu0 0.0
  %1551 = vmatpush1.msra.mxu0 0.0
  %1552 = vmatprep.mubr.f32.mxu0 0.0
  %1553 = vmatmul.mubr.f32.gmra.mrb[0].mxu0 %v1332
  %v1554 = vpop.f32.mrb[0].mxu0
  %v1555 = vadd.f32 0.0, %v1554
  %v1556 = vpop.f32.mrb[0].mxu0
  %v1557 = vadd.f32 0.0, %v1556
  %1558 = vdwg.mxu0
  %v1559 = vld [vmem:[%s6] sm:$0xf]
  %v1560 = vld [vmem:[%s7] sm:$0xf]
  %v1561 = vmul.f32 %v1413, %v745
  %v1562 = vmul.f32 %v1415, %v749
  %v1563 = vmul.f32 %v1484, %v753
  %v1564 = vmul.f32 %v1486, %v757
  %v1565 = vmul.f32 %v1555, %v761
  %v1566 = vmul.f32 %v1557, %v765
  %v1567 = vsel %vm513, %v1561, 0.0
  %v1568 = vsel %vm513, %v1562, 0.0
  %v1569 = vadd.f32 %v1567, %v1568
  %v1570 = vsel %vm513, %v1563, 0.0
  %v1571 = vadd.f32 %v1569, %v1570
  %v1572 = vsel %vm513, %v1564, 0.0
  %v1573 = vadd.f32 %v1571, %v1572
  %v1574 = vsel %vm513, %v1565, 0.0
  %v1575 = vadd.f32 %v1573, %v1574
  %v1576 = vsel %vm337, %v1566, 0.0
  %v1577 = vadd.f32 %v1575, %v1576
  %1578 = vadd.xlane.f32.xlu0 %v1577
  %v1579 = vpop.xlane.xlu0 %1578
  %v1580 = vmul.f32 %v1579, 0.001953125
  %v1581 = vsub.f32 %v1413, %v1580
  %v1582 = vsub.f32 %v1415, %v1580
  %v1583 = vsub.f32 %v1484, %v1580
  %v1584 = vsub.f32 %v1486, %v1580
  %v1585 = vsub.f32 %v1555, %v1580
  %v1586 = vsub.f32 %v1557, %v1580
  %v1587 = vmul.f32 %v1581, %v745
  %v1588 = vmul.f32 %v1582, %v749
  %v1589 = vmul.f32 %v1583, %v753
  %v1590 = vmul.f32 %v1584, %v757
  %v1591 = vmul.f32 %v1585, %v761
  %v1592 = vmul.f32 %v1586, %v765
  %v1593 = vmul.f32 %v1587, %v1587
  %v1594 = vmul.f32 %v1588, %v1588
  %v1595 = vmul.f32 %v1589, %v1589
  %v1596 = vmul.f32 %v1590, %v1590
  %v1597 = vmul.f32 %v1591, %v1591
  %v1598 = vmul.f32 %v1592, %v1592
  %v1599 = vsel %vm513, %v1593, 0.0
  %v1600 = vsel %vm513, %v1594, 0.0
  %v1601 = vadd.f32 %v1599, %v1600
  %v1602 = vsel %vm513, %v1595, 0.0
  %v1603 = vadd.f32 %v1601, %v1602
  %v1604 = vsel %vm513, %v1596, 0.0
  %v1605 = vadd.f32 %v1603, %v1604
  %v1606 = vsel %vm513, %v1597, 0.0
  %v1607 = vadd.f32 %v1605, %v1606
  %v1608 = vsel %vm337, %v1598, 0.0
  %v1609 = vadd.f32 %v1607, %v1608
  %1610 = vadd.xlane.f32.xlu0 %v1609
  %v1611 = vpop.xlane.xlu0 %1610
  %v1612 = vmul.f32 %v1611, 0.001953125
  %v1613 = vadd.f32 %v1612, 1e-05
  %v1614 = vrsqrt.pop %v1613
  %v1615 = vmul.f32 %v1581, %v1614
  %v1616 = vmul.f32 %v1582, %v1614
  %v1617 = vmul.f32 %v1583, %v1614
  %v1618 = vmul.f32 %v1584, %v1614
  %v1619 = vmul.f32 %v1585, %v1614
  %v1620 = vmul.f32 %v1586, %v1614
  %1622 = vset.pattern.permute.xlu0 0
  %1623 = vperm.xlu0 %1622, %v1559
  %v1624 = vpop.permute.xlu0 %1623
  %v1626 = vmul.f32 %v1615, %v1624
  %v1627 = vmul.f32 %v1616, %v1624
  %v1628 = vmul.f32 %v1617, %v1624
  %v1629 = vmul.f32 %v1618, %v1624
  %v1630 = vmul.f32 %v1619, %v1624
  %v1631 = vmul.f32 %v1620, %v1624
  %1633 = vset.pattern.permute.xlu0 0
  %1634 = vperm.xlu0 %1633, %v1560
  %v1635 = vpop.permute.xlu0 %1634
  %v1637 = vadd.f32 %v1626, %v1635
  %v1638 = vadd.f32 %v1627, %v1635
  %v1639 = vadd.f32 %v1628, %v1635
  %v1640 = vadd.f32 %v1629, %v1635
  %v1641 = vadd.f32 %v1630, %v1635
  %v1642 = vadd.f32 %v1631, %v1635
  %v1643 = vadd.f32 %v1637, %v62
  %v1644 = vadd.f32 %v1638, %v68
  %v1645 = vadd.f32 %v1639, %v63
  %v1646 = vadd.f32 %v1640, %v69
  %v1647 = vadd.f32 %v1641, %v64
  %v1648 = vadd.f32 %v1642, %v70
  %v1655 = vcombine.low %v1643, %v1644
  %v1656 = vcombine.low %v1645, %v1646
  %v1657 = vcombine.low %v1647, %v1648
  %1661 = vst [vmem:[%s8] sm:$0xff] %v1655
  %1662 = vst [vmem:[%s8 + $0x8] sm:$0xff] %v1656
  %vm1663 = vcmask 64516
  %vm1664 = vmor %vm1663, %vm513
  %1665 = vst.msk [vmem:[%s8 + $0x10] sm:$0xff] %vm1664, %v1657
  // Predicated region
  $region34: #{res_block_forward.1} parent=0 // pred_check
    _
  $region35: #{res_block_forward.1} parent=0 // pred_check_branch
    %1667 = sbr.rel (0) target = $region37
  $region36: #{res_block_forward.1} parent=0 // pred_region
    _
  $region37: #{res_block_forward.1} parent=0 // pred_fallthru
    _
  // Predicated region
  $region38: #{res_block_forward.1} parent=0 // pred_check
    _
  $region39: #{res_block_forward.1} parent=0 // pred_check_branch
    %1669 = sbr.rel (0) target = $region41
  $region40: #{res_block_forward.1} parent=0 // pred_region
    _
  $region41: #{res_block_forward.1} parent=0 // pred_fallthru
    _

</llo_original>
